<compile_context>
chip_gen: v5e
topology: v5e:2x2
jax: 0.10.0
libtpu: 0.0.40
codegen_flags: <defaults>
</compile_context>

<pallas_src>
import functools

import jax
import jax.numpy as jnp
from jax.experimental import pallas as pl
from jax.experimental.pallas import tpu as pltpu

BOTTLENECK = 5
IN_DIM = 28 * 28  # 784

# Output widths of the 7 fused layers (used for static bias slicing).
_LAYER_WIDTHS = (256, 128, 24, 12, 64, 128, IN_DIM)


def _round_up(n, m):
    return ((n + m - 1) // m) * m


# ----------------------------------------------------------------------------
# Kernel
# ----------------------------------------------------------------------------
def _autoencoder_kernel(
    x_ref,                                   # (tb, 784) input tile (stored dtype)
    w1, w2, w3, w4d1, wd2, wd3, wd4,         # fused weights (f32 or bf16)
    bpack_ref,                               # (8, 784) f32, row i = bias of layer i
    out_ref,                                 # (tb, 784) output tile (f32 or bf16)
):
    bp = bpack_ref[...]                      # tiny, resident

    def linear(h, w_ref, row, relu=True):
        # Operands in the weight dtype (VPU cast is free under the DMA shadow),
        # accumulation in f32 on the MXU.
        y = jnp.dot(h.astype(w_ref.dtype), w_ref[...],
                    preferred_element_type=jnp.float32)
        y = y + bp[row, : _LAYER_WIDTHS[row]]
        return jnp.maximum(y, 0.0) if relu else y

    h = linear(x_ref[...], w1, 0)            # (tb, 256)  fused upper|lower encoders
    h = linear(h, w2, 1)                     # (tb, 128)  block-diagonal
    h = linear(h, w3, 2)                     # (tb, 24)   block-diagonal
    h = linear(h, w4d1, 3)                   # (tb, 12)   enc-L4 @ dec-L1 (+dec ReLU)
    h = linear(h, wd2, 4)                    # (tb, 64)
    h = linear(h, wd3, 5)                    # (tb, 128)
    h = linear(h, wd4, 6, relu=False)        # (tb, 784)
    out_ref[...] = jnp.tanh(h).astype(out_ref.dtype)


# ----------------------------------------------------------------------------
# Parameter fusion (done ONCE, outside the per-call path)
# ----------------------------------------------------------------------------
def _block_diag(a, b):
    za = jnp.zeros((a.shape[0], b.shape[1]), a.dtype)
    zb = jnp.zeros((b.shape[0], a.shape[1]), b.dtype)
    return jnp.concatenate(
        [jnp.concatenate([a, za], axis=1),
         jnp.concatenate([zb, b], axis=1)], axis=0)


def fuse_params(params, compute_dtype=jnp.float32):
    """24 raw (in,out)-layout params -> 7 fused weights + 1 packed-bias array."""
    (w1u, b1u, w2u, b2u, w3u, b3u, w4u, b4u,
     w1l, b1l, w2l, b2l, w3l, b3l, w4l, b4l,
     wd1, bd1, wd2, bd2, wd3, bd3, wd4, bd4) = params

    w1 = jnp.concatenate([w1u, w1l], axis=1)          # (784, 256)
    b1 = jnp.concatenate([b1u, b1l], axis=1)          # (1, 256)
    w2 = _block_diag(w2u, w2l)                        # (256, 128)
    b2 = jnp.concatenate([b2u, b2l], axis=1)          # (1, 128)
    w3 = _block_diag(w3u, w3l)                        # (128, 24)
    b3 = jnp.concatenate([b3u, b3l], axis=1)          # (1, 24)
    w4 = _block_diag(w4u, w4l)                        # (24, 10)
    b4 = jnp.concatenate([b4u, b4l], axis=1)          # (1, 10)

    # Algebraic fusion of encoder layer 4 (no ReLU) with decoder layer 1.
    w4d1 = w4 @ wd1                                    # (24, 12)
    b4d1 = b4 @ wd1 + bd1                              # (1, 12)

    weights = [w1, w2, w3, w4d1, wd2, wd3, wd4]
    biases = [b1, b2, b3, b4d1, bd2, bd3, bd4]

    # Pack all biases into a single (8, 784) f32 array -> one constant DMA.
    bpack = jnp.zeros((8, IN_DIM), jnp.float32)
    for i, b in enumerate(biases):
        bpack = bpack.at[i, : b.shape[1]].set(b[0].astype(jnp.float32))

    return [w.astype(compute_dtype) for w in weights] + [bpack]


# ----------------------------------------------------------------------------
# Forward wrapper
# ----------------------------------------------------------------------------
@functools.partial(jax.jit, static_argnames=("tile_b", "out_dtype"))
def new_autoencoder_forward(x, fused_params, *, tile_b=1024, out_dtype=jnp.float32):
    """x: (B, 784); fused_params: output of fuse_params(). Returns (B, 784)."""
    B, D = x.shape
    assert D == IN_DIM
    out_dtype = jnp.dtype(out_dtype)

    # Tile selection: multiple of 16 (safe for bf16 in/out sublane packing);
    # clamp so the grid has >= 2 steps when possible (v7x megacore sharding).
    tile_b = _round_up(max(int(tile_b), 16), 16)
    tile_b = max(16, min(tile_b, _round_up(pl.cdiv(B, 2), 16)))
    grid_b = pl.cdiv(B, tile_b)               # partial last block: masked by Pallas

    in_specs = [pl.BlockSpec((tile_b, IN_DIM), lambda i: (i, 0))]
    # Constant index maps => weight/bias blocks are fetched once and stay
    # resident in VMEM across grid steps.
    in_specs += [pl.BlockSpec(p.shape, lambda i: (0, 0)) for p in fused_params]
    out_spec = pl.BlockSpec((tile_b, IN_DIM), lambda i: (i, 0))

    # VMEM need derived from tile_b (double-buffered I/O tiles + weights +
    # f32 intermediates), with headroom; never the full 64 MiB of a v7x TC.
    in_bytes = jnp.dtype(x.dtype).itemsize
    out_bytes = out_dtype.itemsize
    w_bytes = sum(int(p.size) * jnp.dtype(p.dtype).itemsize for p in fused_params)
    act_cols = sum(_LAYER_WIDTHS)
    vmem_need = (2 * tile_b * IN_DIM * in_bytes
                 + 2 * tile_b * IN_DIM * out_bytes
                 + 2 * w_bytes
                 + tile_b * act_cols * 4)
    vmem_limit = min(max(int(vmem_need * 1.5), 8 << 20), 48 << 20)

    flops_per_row = 2 * (784 * 256 + 256 * 128 + 128 * 24 + 24 * 12
                         + 12 * 64 + 64 * 128 + 128 * 784)
    cost = pl.CostEstimate(
        flops=B * flops_per_row,
        transcendentals=B * IN_DIM,
        bytes_accessed=B * IN_DIM * (in_bytes + out_bytes) + w_bytes,
    )

    return pl.pallas_call(
        _autoencoder_kernel,
        out_shape=jax.ShapeDtypeStruct((B, IN_DIM), out_dtype),
        grid_spec=pltpu.PrefetchScalarGridSpec(
            num_scalar_prefetch=0,
            grid=(grid_b,),
            in_specs=in_specs,
            out_specs=out_spec,
        ),
        compiler_params=pltpu.CompilerParams(
            dimension_semantics=("parallel",),   # batch axis -> megacore sharding
            vmem_limit_bytes=vmem_limit,
        ),
        cost_estimate=cost,
    )(x, *fused_params)


# ----------------------------------------------------------------------------
# Init + plain-JAX reference (mirrors the PyTorch module)
# ----------------------------------------------------------------------------
def init_params(key):
    """Deterministic synthetic init. Weights stored (in, out); biases as (1, out)."""
    dims_enc = [(IN_DIM, 128), (128, 64), (64, 12), (12, BOTTLENECK)]
    dims_dec = [(2 * BOTTLENECK, 12), (12, 64), (64, 128), (128, IN_DIM)]

    params = []
    for dims in (dims_enc, dims_enc, dims_dec):  # upper, lower, decoder
        for (din, dout) in dims:
            key, kw, kb = jax.random.split(key, 3)
            bound = 1.0 / jnp.sqrt(din)
            w = jax.random.uniform(kw, (din, dout), jnp.float32, -bound, bound)
            b = jax.random.uniform(kb, (1, dout), jnp.float32, -bound, bound)
            params.append(w)
            params.append(b)
    return params


def reference_forward(x, params):
    (w1u, b1u, w2u, b2u, w3u, b3u, w4u, b4u,
     w1l, b1l, w2l, b2l, w3l, b3l, w4l, b4l,
     wd1, bd1, wd2, bd2, wd3, bd3, wd4, bd4) = params

    def enc(x, w1, b1, w2, b2, w3, b3, w4, b4):
        h = jnp.maximum(x @ w1 + b1, 0.0)
        h = jnp.maximum(h @ w2 + b2, 0.0)
        h = jnp.maximum(h @ w3 + b3, 0.0)
        return h @ w4 + b4

    c = enc(x, w1u, b1u, w2u, b2u, w3u, b3u, w4u, b4u)
    f = enc(x, w1l, b1l, w2l, b2l, w3l, b3l, w4l, b4l)
    combined = jnp.concatenate([c, f], axis=1)
    d = jnp.maximum(combined @ wd1 + bd1, 0.0)
    d = jnp.maximum(d @ wd2 + bd2, 0.0)
    d = jnp.maximum(d @ wd3 + bd3, 0.0)
    return jnp.tanh(d @ wd4 + bd4)


if __name__ == "__main__":
    key = jax.random.PRNGKey(0)
    kp, kx = jax.random.split(key)

    params = init_params(kp)

    # --- f32 path (multi-step grid via the >=2-step clamp) ----------------------
    B = 64
    x = jax.random.normal(kx, (B, IN_DIM), jnp.float32)
    fused_f32 = fuse_params(params, jnp.float32)

    out = jax.block_until_ready(new_autoencoder_forward(x, fused_f32))
    ref = reference_forward(x, params)
    assert out.shape == (B, IN_DIM) and out.dtype == jnp.float32
    assert jnp.allclose(out, ref, atol=1e-3, rtol=1e-3), "f32 mismatch vs reference"

    # --- ragged batch: grid = cdiv(B, tile_b), partial last block masked --------
    B2 = 37
    x2 = jax.random.normal(kx, (B2, IN_DIM), jnp.float32)
    out2 = jax.block_until_ready(new_autoencoder_forward(x2, fused_f32, tile_b=16))
    ref2 = reference_forward(x2, params)
    assert out2.shape == (B2, IN_DIM)
    assert jnp.allclose(out2, ref2, atol=1e-3, rtol=1e-3), "ragged-batch mismatch"

    # --- bf16 weights / f32 accumulation (v5e default, v6e/v7x fast path) -------
    fused_bf16 = fuse_params(params, jnp.bfloat16)
    out_bf = jax.block_until_ready(new_autoencoder_forward(x, fused_bf16))
    assert out_bf.shape == (B, IN_DIM)
    assert float(jnp.max(jnp.abs(out_bf - ref))) < 5e-2, "bf16-weight path mismatch"

    # --- bf16 output (halves the dominant output HBM stream) --------------------
    out_bo = jax.block_until_ready(
        new_autoencoder_forward(x, fused_f32, out_dtype=jnp.bfloat16))
    assert out_bo.shape == (B, IN_DIM) and out_bo.dtype == jnp.bfloat16
    assert float(jnp.max(jnp.abs(out_bo.astype(jnp.float32) - ref))) < 2e-2, \
        "bf16-output path mismatch"

    print("KERNEL_OK")
</pallas_src>

<mosaic_0001>
module attributes {stable_mosaic.version = 11 : i64} {
  func.func @_autoencoder_kernel(%arg0: i32, %arg1: memref<32x784xf32, #tpu.memory_space<vmem>>, %arg2: memref<784x256xf32, #tpu.memory_space<vmem>>, %arg3: memref<256x128xf32, #tpu.memory_space<vmem>>, %arg4: memref<128x24xf32, #tpu.memory_space<vmem>>, %arg5: memref<24x12xf32, #tpu.memory_space<vmem>>, %arg6: memref<12x64xf32, #tpu.memory_space<vmem>>, %arg7: memref<64x128xf32, #tpu.memory_space<vmem>>, %arg8: memref<128x784xf32, #tpu.memory_space<vmem>>, %arg9: memref<8x784xf32, #tpu.memory_space<vmem>>, %arg10: memref<32x784xf32, #tpu.memory_space<vmem>>) attributes {dimension_semantics = [#tpu.dimension_semantics<parallel>], iteration_bounds = array<i64: 2>, scalar_prefetch = 0 : i64, scratch_operands = 0 : i64, tpu.core_type = #tpu.core_type<tc>, window_params = [{transform_indices = @transform_0, window_bounds = array<i64: 32, 784>}, {pipeline_mode = #tpu.pipeline_mode<synchronous>, transform_indices = @transform_1, window_bounds = array<i64: 784, 256>}, {pipeline_mode = #tpu.pipeline_mode<synchronous>, transform_indices = @transform_2, window_bounds = array<i64: 256, 128>}, {pipeline_mode = #tpu.pipeline_mode<synchronous>, transform_indices = @transform_3, window_bounds = array<i64: 128, 24>}, {pipeline_mode = #tpu.pipeline_mode<synchronous>, transform_indices = @transform_4, window_bounds = array<i64: 24, 12>}, {pipeline_mode = #tpu.pipeline_mode<synchronous>, transform_indices = @transform_5, window_bounds = array<i64: 12, 64>}, {pipeline_mode = #tpu.pipeline_mode<synchronous>, transform_indices = @transform_6, window_bounds = array<i64: 64, 128>}, {pipeline_mode = #tpu.pipeline_mode<synchronous>, transform_indices = @transform_7, window_bounds = array<i64: 128, 784>}, {pipeline_mode = #tpu.pipeline_mode<synchronous>, transform_indices = @transform_8, window_bounds = array<i64: 8, 784>}, {transform_indices = @transform_9, window_bounds = array<i64: 32, 784>}]} {
    %c0 = arith.constant 0 : index
    %c0_0 = arith.constant 0 : index
    %0 = vector.load %arg9[%c0, %c0_0] : memref<8x784xf32, #tpu.memory_space<vmem>>, vector<8x784xf32>
    %c0_1 = arith.constant 0 : index
    %c0_2 = arith.constant 0 : index
    %1 = vector.load %arg1[%c0_1, %c0_2] : memref<32x784xf32, #tpu.memory_space<vmem>>, vector<32x784xf32>
    %c0_3 = arith.constant 0 : index
    %c0_4 = arith.constant 0 : index
    %2 = vector.load %arg2[%c0_3, %c0_4] : memref<784x256xf32, #tpu.memory_space<vmem>>, vector<784x256xf32>
    %cst = arith.constant dense<0.000000e+00> : vector<32x256xf32>
    %3 = tpu.matmul %1, %2, %cst {dimension_numbers = #tpu.dot_dimension_numbers<[1], [0], [0], [1], [0, 0, 1, 1], [], []>} : vector<32x784xf32>, vector<784x256xf32>, vector<32x256xf32> -> vector<32x256xf32>
    %4 = vector.extract_strided_slice %0 {offsets = [0, 0], sizes = [1, 256], strides = [1, 1]} : vector<8x784xf32> to vector<1x256xf32>
    %5 = vector.shape_cast %4 : vector<1x256xf32> to vector<256xf32>
    %6 = vector.shape_cast %5 : vector<256xf32> to vector<1x256xf32>
    %7 = vector.broadcast %6 : vector<1x256xf32> to vector<32x256xf32>
    %8 = arith.addf %3, %7 : vector<32x256xf32>
    %cst_5 = arith.constant 0.000000e+00 : f32
    %9 = vector.broadcast %cst_5 : f32 to vector<32x256xf32>
    %10 = arith.maximumf %8, %9 : vector<32x256xf32>
    %c0_6 = arith.constant 0 : index
    %c0_7 = arith.constant 0 : index
    %11 = vector.load %arg3[%c0_6, %c0_7] : memref<256x128xf32, #tpu.memory_space<vmem>>, vector<256x128xf32>
    %cst_8 = arith.constant dense<0.000000e+00> : vector<32x128xf32>
    %12 = tpu.matmul %10, %11, %cst_8 {dimension_numbers = #tpu.dot_dimension_numbers<[1], [0], [0], [1], [0, 0, 1, 1], [], []>} : vector<32x256xf32>, vector<256x128xf32>, vector<32x128xf32> -> vector<32x128xf32>
    %13 = vector.extract_strided_slice %0 {offsets = [1, 0], sizes = [1, 128], strides = [1, 1]} : vector<8x784xf32> to vector<1x128xf32>
    %14 = vector.shape_cast %13 : vector<1x128xf32> to vector<128xf32>
    %15 = vector.shape_cast %14 : vector<128xf32> to vector<1x128xf32>
    %16 = vector.broadcast %15 : vector<1x128xf32> to vector<32x128xf32>
    %17 = arith.addf %12, %16 : vector<32x128xf32>
    %cst_9 = arith.constant 0.000000e+00 : f32
    %18 = vector.broadcast %cst_9 : f32 to vector<32x128xf32>
    %19 = arith.maximumf %17, %18 : vector<32x128xf32>
    %c0_10 = arith.constant 0 : index
    %c0_11 = arith.constant 0 : index
    %20 = vector.load %arg4[%c0_10, %c0_11] : memref<128x24xf32, #tpu.memory_space<vmem>>, vector<128x24xf32>
    %cst_12 = arith.constant dense<0.000000e+00> : vector<32x24xf32>
    %21 = tpu.matmul %19, %20, %cst_12 {dimension_numbers = #tpu.dot_dimension_numbers<[1], [0], [0], [1], [0, 0, 1, 1], [], []>} : vector<32x128xf32>, vector<128x24xf32>, vector<32x24xf32> -> vector<32x24xf32>
    %22 = vector.extract_strided_slice %0 {offsets = [2, 0], sizes = [1, 24], strides = [1, 1]} : vector<8x784xf32> to vector<1x24xf32>
    %23 = vector.shape_cast %22 : vector<1x24xf32> to vector<24xf32>
    %24 = vector.shape_cast %23 : vector<24xf32> to vector<1x24xf32>
    %25 = vector.broadcast %24 : vector<1x24xf32> to vector<32x24xf32>
    %26 = arith.addf %21, %25 : vector<32x24xf32>
    %cst_13 = arith.constant 0.000000e+00 : f32
    %27 = vector.broadcast %cst_13 : f32 to vector<32x24xf32>
    %28 = arith.maximumf %26, %27 : vector<32x24xf32>
    %c0_14 = arith.constant 0 : index
    %c0_15 = arith.constant 0 : index
    %29 = vector.load %arg5[%c0_14, %c0_15] : memref<24x12xf32, #tpu.memory_space<vmem>>, vector<24x12xf32>
    %cst_16 = arith.constant dense<0.000000e+00> : vector<32x12xf32>
    %30 = tpu.matmul %28, %29, %cst_16 {dimension_numbers = #tpu.dot_dimension_numbers<[1], [0], [0], [1], [0, 0, 1, 1], [], []>} : vector<32x24xf32>, vector<24x12xf32>, vector<32x12xf32> -> vector<32x12xf32>
    %31 = vector.extract_strided_slice %0 {offsets = [3, 0], sizes = [1, 12], strides = [1, 1]} : vector<8x784xf32> to vector<1x12xf32>
    %32 = vector.shape_cast %31 : vector<1x12xf32> to vector<12xf32>
    %33 = vector.shape_cast %32 : vector<12xf32> to vector<1x12xf32>
    %34 = vector.broadcast %33 : vector<1x12xf32> to vector<32x12xf32>
    %35 = arith.addf %30, %34 : vector<32x12xf32>
    %cst_17 = arith.constant 0.000000e+00 : f32
    %36 = vector.broadcast %cst_17 : f32 to vector<32x12xf32>
    %37 = arith.maximumf %35, %36 : vector<32x12xf32>
    %c0_18 = arith.constant 0 : index
    %c0_19 = arith.constant 0 : index
    %38 = vector.load %arg6[%c0_18, %c0_19] : memref<12x64xf32, #tpu.memory_space<vmem>>, vector<12x64xf32>
    %cst_20 = arith.constant dense<0.000000e+00> : vector<32x64xf32>
    %39 = tpu.matmul %37, %38, %cst_20 {dimension_numbers = #tpu.dot_dimension_numbers<[1], [0], [0], [1], [0, 0, 1, 1], [], []>} : vector<32x12xf32>, vector<12x64xf32>, vector<32x64xf32> -> vector<32x64xf32>
    %40 = vector.extract_strided_slice %0 {offsets = [4, 0], sizes = [1, 64], strides = [1, 1]} : vector<8x784xf32> to vector<1x64xf32>
    %41 = vector.shape_cast %40 : vector<1x64xf32> to vector<64xf32>
    %42 = vector.shape_cast %41 : vector<64xf32> to vector<1x64xf32>
    %43 = vector.broadcast %42 : vector<1x64xf32> to vector<32x64xf32>
    %44 = arith.addf %39, %43 : vector<32x64xf32>
    %cst_21 = arith.constant 0.000000e+00 : f32
    %45 = vector.broadcast %cst_21 : f32 to vector<32x64xf32>
    %46 = arith.maximumf %44, %45 : vector<32x64xf32>
    %c0_22 = arith.constant 0 : index
    %c0_23 = arith.constant 0 : index
    %47 = vector.load %arg7[%c0_22, %c0_23] : memref<64x128xf32, #tpu.memory_space<vmem>>, vector<64x128xf32>
    %cst_24 = arith.constant dense<0.000000e+00> : vector<32x128xf32>
    %48 = tpu.matmul %46, %47, %cst_24 {dimension_numbers = #tpu.dot_dimension_numbers<[1], [0], [0], [1], [0, 0, 1, 1], [], []>} : vector<32x64xf32>, vector<64x128xf32>, vector<32x128xf32> -> vector<32x128xf32>
    %49 = vector.extract_strided_slice %0 {offsets = [5, 0], sizes = [1, 128], strides = [1, 1]} : vector<8x784xf32> to vector<1x128xf32>
    %50 = vector.shape_cast %49 : vector<1x128xf32> to vector<128xf32>
    %51 = vector.shape_cast %50 : vector<128xf32> to vector<1x128xf32>
    %52 = vector.broadcast %51 : vector<1x128xf32> to vector<32x128xf32>
    %53 = arith.addf %48, %52 : vector<32x128xf32>
    %cst_25 = arith.constant 0.000000e+00 : f32
    %54 = vector.broadcast %cst_25 : f32 to vector<32x128xf32>
    %55 = arith.maximumf %53, %54 : vector<32x128xf32>
    %c0_26 = arith.constant 0 : index
    %c0_27 = arith.constant 0 : index
    %56 = vector.load %arg8[%c0_26, %c0_27] : memref<128x784xf32, #tpu.memory_space<vmem>>, vector<128x784xf32>
    %cst_28 = arith.constant dense<0.000000e+00> : vector<32x784xf32>
    %57 = tpu.matmul %55, %56, %cst_28 {dimension_numbers = #tpu.dot_dimension_numbers<[1], [0], [0], [1], [0, 0, 1, 1], [], []>} : vector<32x128xf32>, vector<128x784xf32>, vector<32x784xf32> -> vector<32x784xf32>
    %58 = vector.extract_strided_slice %0 {offsets = [6, 0], sizes = [1, 784], strides = [1, 1]} : vector<8x784xf32> to vector<1x784xf32>
    %59 = vector.shape_cast %58 : vector<1x784xf32> to vector<784xf32>
    %60 = vector.shape_cast %59 : vector<784xf32> to vector<1x784xf32>
    %61 = vector.broadcast %60 : vector<1x784xf32> to vector<32x784xf32>
    %62 = arith.addf %57, %61 : vector<32x784xf32>
    %63 = math.tanh %62 : vector<32x784xf32>
    %c0_29 = arith.constant 0 : index
    %c0_30 = arith.constant 0 : index
    %64 = vector.load %arg10[%c0_29, %c0_30] : memref<32x784xf32, #tpu.memory_space<vmem>>, vector<32x784xf32>
    tpu.vector_store %arg10[%c0_29, %c0_30], %63 {strides = array<i32>} : memref<32x784xf32, #tpu.memory_space<vmem>>, vector<32x784xf32>,
    return
  }
  func.func @transform_0(%arg0: i32) -> (i32, i32) {
    %c0_i32 = arith.constant 0 : i32
    %c0_i32_0 = arith.constant 0 : i32
    return %arg0, %c0_i32 : i32, i32
  }
  func.func @transform_1(%arg0: i32) -> (i32, i32) {
    %c0_i32 = arith.constant 0 : i32
    %c0_i32_0 = arith.constant 0 : i32
    %c0_i32_1 = arith.constant 0 : i32
    return %c0_i32, %c0_i32_0 : i32, i32
  }
  func.func @transform_2(%arg0: i32) -> (i32, i32) {
    %c0_i32 = arith.constant 0 : i32
    %c0_i32_0 = arith.constant 0 : i32
    %c0_i32_1 = arith.constant 0 : i32
    return %c0_i32, %c0_i32_0 : i32, i32
  }
  func.func @transform_3(%arg0: i32) -> (i32, i32) {
    %c0_i32 = arith.constant 0 : i32
    %c0_i32_0 = arith.constant 0 : i32
    %c0_i32_1 = arith.constant 0 : i32
    return %c0_i32, %c0_i32_0 : i32, i32
  }
  func.func @transform_4(%arg0: i32) -> (i32, i32) {
    %c0_i32 = arith.constant 0 : i32
    %c0_i32_0 = arith.constant 0 : i32
    %c0_i32_1 = arith.constant 0 : i32
    return %c0_i32, %c0_i32_0 : i32, i32
  }
  func.func @transform_5(%arg0: i32) -> (i32, i32) {
    %c0_i32 = arith.constant 0 : i32
    %c0_i32_0 = arith.constant 0 : i32
    %c0_i32_1 = arith.constant 0 : i32
    return %c0_i32, %c0_i32_0 : i32, i32
  }
  func.func @transform_6(%arg0: i32) -> (i32, i32) {
    %c0_i32 = arith.constant 0 : i32
    %c0_i32_0 = arith.constant 0 : i32
    %c0_i32_1 = arith.constant 0 : i32
    return %c0_i32, %c0_i32_0 : i32, i32
  }
  func.func @transform_7(%arg0: i32) -> (i32, i32) {
    %c0_i32 = arith.constant 0 : i32
    %c0_i32_0 = arith.constant 0 : i32
    %c0_i32_1 = arith.constant 0 : i32
    return %c0_i32, %c0_i32_0 : i32, i32
  }
  func.func @transform_8(%arg0: i32) -> (i32, i32) {
    %c0_i32 = arith.constant 0 : i32
    %c0_i32_0 = arith.constant 0 : i32
    %c0_i32_1 = arith.constant 0 : i32
    return %c0_i32, %c0_i32_0 : i32, i32
  }
  func.func @transform_9(%arg0: i32) -> (i32, i32) {
    %c0_i32 = arith.constant 0 : i32
    %c0_i32_0 = arith.constant 0 : i32
    return %arg0, %c0_i32 : i32, i32
  }
}

</mosaic_0001>

<llo_original>
// kernel: new_autoencoder_forward.1
$region0: #{new_autoencoder_forward.1}
  #allocation0 [shape = 'u32[]', space=smem, size = 0x4, offset = 0x4, fixed_abs, tag = 'smem constant byte address 0x4 - core index']
  #allocation1 [shape = 'u32[72,128]{1,0:T(1,128)}', space=vmem, size = 0x9000, scoped, tag = 'internal scratch']
  %s0 = inlined_call_operand.hbm [shape: f32[64,784], index: 0, kind: input, shape index: {}]
  %s1 = inlined_call_operand.vmem [shape: f32[784,256], index: 1, kind: input, shape index: {}]
  %s2 = inlined_call_operand.vmem [shape: f32[256,128], index: 2, kind: input, shape index: {}]
  %s3 = inlined_call_operand.vmem [shape: f32[128,24], index: 3, kind: input, shape index: {}]
  %s4 = inlined_call_operand.vmem [shape: f32[24,12], index: 4, kind: input, shape index: {}]
  %s5 = inlined_call_operand.vmem [shape: f32[12,64], index: 5, kind: input, shape index: {}]
  %s6 = inlined_call_operand.hbm [shape: f32[64,128], index: 6, kind: input, shape index: {}]
  %s7 = inlined_call_operand.vmem [shape: f32[128,784], index: 7, kind: input, shape index: {}]
  %s8 = inlined_call_operand.hbm [shape: f32[8,784], index: 8, kind: input, shape index: {}]
  %s9 = inlined_call_operand.hbm [shape: f32[64,784], index: 9, kind: output, shape index: {}]
  %s10 = sld [smem:[#allocation0]]
  $region81: #{new_autoencoder_forward.1} parent=0
    _
  %s12 = ssub.s32 1, %s10
  %s13 = scalar_select 0, %s12, %s10
  $region1: #{new_autoencoder_forward.1} parent=0
    #allocation2 [shape = 'u8[229376]{0}', space=vmem, size = 0x38000, scoped, tag = 'input window, operand 0']
    #allocation3 [shape = 's32[2]{0}', space=sflag, size = 0x8, scoped, tag = 'scoped memory for new_autoencoder_forward.1']
    #allocation4 [shape = 's32[2]{0}', space=sflag, size = 0x8, scoped, tag = 'scoped memory for new_autoencoder_forward.1']
    #allocation5 [shape = 'u8[32768]{0}', space=vmem, size = 0x8000, scoped, tag = 'input window, operand 6, single buffered']
    #allocation6 [shape = 's32[1]{0}', space=sflag, size = 0x4, scoped, tag = 'scoped memory for new_autoencoder_forward.1']
    #allocation7 [shape = 'u8[28672]{0}', space=vmem, size = 0x7000, scoped, tag = 'input window, operand 8, single buffered']
    #allocation8 [shape = 'u8[229376]{0}', space=vmem, size = 0x38000, scoped, tag = 'output window, operand 0']
    %14 = vsyncpa [#allocation3], 0
    %s15 = scalar_lea.sflag [#allocation3], 1
    %16 = vsyncpa %s15, 0
    %17 = vsyncpa [#allocation6], 0
    %18 = vsyncpa [#allocation4], 0
    %s19 = scalar_lea.sflag [#allocation4], 1
    %20 = vsyncpa %s19, 0
    loop: start=0, step=1, limit=4
    $region2: #{new_autoencoder_forward.1} parent=1 // loop_pre_header
      _
    $region3: #{new_autoencoder_forward.1} parent=1 // loop_header
      %s22 = sphi 0, %s26
      %p23 = scmp.ge.s32.totalorder %s22, 4
      %s32 = sphi 0, %s34
      %s35 = sphi 0, %s32
      %s36 = sphi 0, %s35
      %s52 = sphi 0, %s36
      %s56 = sphi 0, %s56
      %s58 = sphi 0, %s56
      %s59 = sphi 0, %s58
      %s73 = sphi 0, %s59
      %s77 = sphi 0, %s77
      %s79 = sphi 0, %s77
      %s80 = sphi 0, %s79
      %s94 = sphi 0, %s80
      %s98 = sphi 0, %s98
      %s100 = sphi 0, %s98
      %s101 = sphi 0, %s100
      %s115 = sphi 0, %s101
      %s119 = sphi 0, %s119
      %s121 = sphi 0, %s119
      %s122 = sphi 0, %s121
      %s136 = sphi 0, %s122
      %s140 = sphi 0, %s140
      %s142 = sphi 0, %s140
      %s143 = sphi 0, %s142
      %s157 = sphi 0, %s143
      %s161 = sphi 0, %s161
      %s163 = sphi 0, %s161
      %s164 = sphi 0, %s163
      %s178 = sphi 0, %s164
      %s182 = sphi 0, %s182
      %s184 = sphi 0, %s182
      %s185 = sphi 0, %s184
      %s199 = sphi 0, %s185
      %s203 = sphi 0, %s203
      %s205 = sphi 0, %s203
      %s206 = sphi 0, %s205
      %s220 = sphi 0, %s206
      %s226 = sphi 0, %s228
      %s229 = sphi 0, %s226
      %s230 = sphi 0, %s229
      %s246 = sphi 0, %s230
    $region4: #{new_autoencoder_forward.1} parent=1 // loop_header_branch
      %25 = sbr.rel (%p23) target = $region8
    $region5: #{new_autoencoder_forward.1} parent=1 // loop_body
      %s27 = ssub.s32 %s22, 1
      %s28 = ssub.s32 %s22, 2
      %s29 = sadd.s32 %s22, 1
      %s30 = ssub.s32 %s22, %s29
      %p31 = scmp.eq.s32.totalorder %s30, 0
      %s33 = sadd.s32 %s32, 1
      %s34 = scalar_select %p31, %s32, %s33
      %p37 = pneg %p31
      %p38 = scmp.eq.s32.totalorder %s22, 1
      %p39 = por %p37, %p38
      %p40 = scmp.ne.s32.totalorder %s32, %s35
      %p41 = scmp.eq.s32.totalorder %s22, 0
      %p42 = por %p40, %p41
      %p43 = scmp.ne.s32.totalorder %s32, %s35
      %p44 = scmp.eq.s32.totalorder %s27, 1
      %p45 = por %p43, %p44
      %p46 = scmp.ne.s32.totalorder %s35, %s36
      %p47 = scmp.eq.s32.totalorder %s27, 0
      %p48 = por %p46, %p47
      %p49 = scmp.ne.s32.totalorder %s35, %s36
      %p50 = scmp.eq.s32.totalorder %s28, 1
      %p51 = por %p49, %p50
      %p53 = scmp.ne.s32.totalorder %s36, %s52
      %p54 = scmp.eq.s32.totalorder %s28, 0
      %p55 = por %p53, %p54
      %s57 = sadd.s32 %s56, 1
      %p60 = scmp.eq.s32.totalorder %s22, 1
      %p61 = scmp.ne.s32.totalorder %s56, %s58
      %p62 = scmp.eq.s32.totalorder %s22, 0
      %p63 = por %p61, %p62
      %p64 = scmp.ne.s32.totalorder %s56, %s58
      %p65 = scmp.eq.s32.totalorder %s27, 1
      %p66 = por %p64, %p65
      %p67 = scmp.ne.s32.totalorder %s58, %s59
      %p68 = scmp.eq.s32.totalorder %s27, 0
      %p69 = por %p67, %p68
      %p70 = scmp.ne.s32.totalorder %s58, %s59
      %p71 = scmp.eq.s32.totalorder %s28, 1
      %p72 = por %p70, %p71
      %p74 = scmp.ne.s32.totalorder %s59, %s73
      %p75 = scmp.eq.s32.totalorder %s28, 0
      %p76 = por %p74, %p75
      %s78 = sadd.s32 %s77, 1
      %p81 = scmp.eq.s32.totalorder %s22, 1
      %p82 = scmp.ne.s32.totalorder %s77, %s79
      %p83 = scmp.eq.s32.totalorder %s22, 0
      %p84 = por %p82, %p83
      %p85 = scmp.ne.s32.totalorder %s77, %s79
      %p86 = scmp.eq.s32.totalorder %s27, 1
      %p87 = por %p85, %p86
      %p88 = scmp.ne.s32.totalorder %s79, %s80
      %p89 = scmp.eq.s32.totalorder %s27, 0
      %p90 = por %p88, %p89
      %p91 = scmp.ne.s32.totalorder %s79, %s80
      %p92 = scmp.eq.s32.totalorder %s28, 1
      %p93 = por %p91, %p92
      %p95 = scmp.ne.s32.totalorder %s80, %s94
      %p96 = scmp.eq.s32.totalorder %s28, 0
      %p97 = por %p95, %p96
      %s99 = sadd.s32 %s98, 1
      %p102 = scmp.eq.s32.totalorder %s22, 1
      %p103 = scmp.ne.s32.totalorder %s98, %s100
      %p104 = scmp.eq.s32.totalorder %s22, 0
      %p105 = por %p103, %p104
      %p106 = scmp.ne.s32.totalorder %s98, %s100
      %p107 = scmp.eq.s32.totalorder %s27, 1
      %p108 = por %p106, %p107
      %p109 = scmp.ne.s32.totalorder %s100, %s101
      %p110 = scmp.eq.s32.totalorder %s27, 0
      %p111 = por %p109, %p110
      %p112 = scmp.ne.s32.totalorder %s100, %s101
      %p113 = scmp.eq.s32.totalorder %s28, 1
      %p114 = por %p112, %p113
      %p116 = scmp.ne.s32.totalorder %s101, %s115
      %p117 = scmp.eq.s32.totalorder %s28, 0
      %p118 = por %p116, %p117
      %s120 = sadd.s32 %s119, 1
      %p123 = scmp.eq.s32.totalorder %s22, 1
      %p124 = scmp.ne.s32.totalorder %s119, %s121
      %p125 = scmp.eq.s32.totalorder %s22, 0
      %p126 = por %p124, %p125
      %p127 = scmp.ne.s32.totalorder %s119, %s121
      %p128 = scmp.eq.s32.totalorder %s27, 1
      %p129 = por %p127, %p128
      %p130 = scmp.ne.s32.totalorder %s121, %s122
      %p131 = scmp.eq.s32.totalorder %s27, 0
      %p132 = por %p130, %p131
      %p133 = scmp.ne.s32.totalorder %s121, %s122
      %p134 = scmp.eq.s32.totalorder %s28, 1
      %p135 = por %p133, %p134
      %p137 = scmp.ne.s32.totalorder %s122, %s136
      %p138 = scmp.eq.s32.totalorder %s28, 0
      %p139 = por %p137, %p138
      %s141 = sadd.s32 %s140, 1
      %p144 = scmp.eq.s32.totalorder %s22, 1
      %p145 = scmp.ne.s32.totalorder %s140, %s142
      %p146 = scmp.eq.s32.totalorder %s22, 0
      %p147 = por %p145, %p146
      %p148 = scmp.ne.s32.totalorder %s140, %s142
      %p149 = scmp.eq.s32.totalorder %s27, 1
      %p150 = por %p148, %p149
      %p151 = scmp.ne.s32.totalorder %s142, %s143
      %p152 = scmp.eq.s32.totalorder %s27, 0
      %p153 = por %p151, %p152
      %p154 = scmp.ne.s32.totalorder %s142, %s143
      %p155 = scmp.eq.s32.totalorder %s28, 1
      %p156 = por %p154, %p155
      %p158 = scmp.ne.s32.totalorder %s143, %s157
      %p159 = scmp.eq.s32.totalorder %s28, 0
      %p160 = por %p158, %p159
      %s162 = sadd.s32 %s161, 1
      %p165 = scmp.eq.s32.totalorder %s22, 1
      %p166 = scmp.ne.s32.totalorder %s161, %s163
      %p167 = scmp.eq.s32.totalorder %s22, 0
      %p168 = por %p166, %p167
      %p169 = scmp.ne.s32.totalorder %s161, %s163
      %p170 = scmp.eq.s32.totalorder %s27, 1
      %p171 = por %p169, %p170
      %p172 = scmp.ne.s32.totalorder %s163, %s164
      %p173 = scmp.eq.s32.totalorder %s27, 0
      %p174 = por %p172, %p173
      %p175 = scmp.ne.s32.totalorder %s163, %s164
      %p176 = scmp.eq.s32.totalorder %s28, 1
      %p177 = por %p175, %p176
      %p179 = scmp.ne.s32.totalorder %s164, %s178
      %p180 = scmp.eq.s32.totalorder %s28, 0
      %p181 = por %p179, %p180
      %s183 = sadd.s32 %s182, 1
      %p186 = scmp.eq.s32.totalorder %s22, 1
      %p187 = scmp.ne.s32.totalorder %s182, %s184
      %p188 = scmp.eq.s32.totalorder %s22, 0
      %p189 = por %p187, %p188
      %p190 = scmp.ne.s32.totalorder %s182, %s184
      %p191 = scmp.eq.s32.totalorder %s27, 1
      %p192 = por %p190, %p191
      %p193 = scmp.ne.s32.totalorder %s184, %s185
      %p194 = scmp.eq.s32.totalorder %s27, 0
      %p195 = por %p193, %p194
      %p196 = scmp.ne.s32.totalorder %s184, %s185
      %p197 = scmp.eq.s32.totalorder %s28, 1
      %p198 = por %p196, %p197
      %p200 = scmp.ne.s32.totalorder %s185, %s199
      %p201 = scmp.eq.s32.totalorder %s28, 0
      %p202 = por %p200, %p201
      %s204 = sadd.s32 %s203, 1
      %p207 = scmp.eq.s32.totalorder %s22, 1
      %p208 = scmp.ne.s32.totalorder %s203, %s205
      %p209 = scmp.eq.s32.totalorder %s22, 0
      %p210 = por %p208, %p209
      %p211 = scmp.ne.s32.totalorder %s203, %s205
      %p212 = scmp.eq.s32.totalorder %s27, 1
      %p213 = por %p211, %p212
      %p214 = scmp.ne.s32.totalorder %s205, %s206
      %p215 = scmp.eq.s32.totalorder %s27, 0
      %p216 = por %p214, %p215
      %p217 = scmp.ne.s32.totalorder %s205, %s206
      %p218 = scmp.eq.s32.totalorder %s28, 1
      %p219 = por %p217, %p218
      %p221 = scmp.ne.s32.totalorder %s206, %s220
      %p222 = scmp.eq.s32.totalorder %s28, 0
      %p223 = por %p221, %p222
      %s224 = ssub.s32 %s22, %s29
      %p225 = scmp.eq.s32.totalorder %s224, 0
      %s227 = sadd.s32 %s226, 1
      %s228 = scalar_select %p225, %s226, %s227
      %p231 = pneg %p225
      %p232 = scmp.eq.s32.totalorder %s22, 1
      %p233 = por %p231, %p232
      %p234 = scmp.ne.s32.totalorder %s226, %s229
      %p235 = scmp.eq.s32.totalorder %s22, 0
      %p236 = por %p234, %p235
      %p237 = scmp.ne.s32.totalorder %s226, %s229
      %p238 = scmp.eq.s32.totalorder %s27, 1
      %p239 = por %p237, %p238
      %p240 = scmp.ne.s32.totalorder %s229, %s230
      %p241 = scmp.eq.s32.totalorder %s27, 0
      %p242 = por %p240, %p241
      %p243 = scmp.ne.s32.totalorder %s229, %s230
      %p244 = scmp.eq.s32.totalorder %s28, 1
      %p245 = por %p243, %p244
      %p247 = scmp.ne.s32.totalorder %s230, %s246
      %p248 = scmp.eq.s32.totalorder %s28, 0
      %p249 = por %p247, %p248
      %p250 = scmp.le.s32.totalorder 1, %s22
      %p251 = scmp.lt.s32.totalorder %s22, 3
      %p252 = pnand %p250, %p251
      %p253 = pneg %p252
      // Predicated region
      $region9: #{new_autoencoder_forward.1} parent=5 // pred_check
        _
      $region10: #{new_autoencoder_forward.1} parent=5 // pred_check_branch
        %255 = sbr.rel (%p252) target = $region12
      $region11: #{new_autoencoder_forward.1} parent=5 // pred_region
        %s256 = ssub.s32 %s22, 1
        // Predicated region
        $region13: #{new_autoencoder_forward.1} parent=11 // pred_check
          %p257 = pneg %p69
        $region14: #{new_autoencoder_forward.1} parent=11 // pred_check_branch
          %259 = sbr.rel (%p257) target = $region16
        $region15: #{new_autoencoder_forward.1} parent=11 // pred_region
          _
        $region16: #{new_autoencoder_forward.1} parent=11 // pred_fallthru
          _
        // Predicated region
        $region17: #{new_autoencoder_forward.1} parent=11 // pred_check
          %p260 = pneg %p90
        $region18: #{new_autoencoder_forward.1} parent=11 // pred_check_branch
          %262 = sbr.rel (%p260) target = $region20
        $region19: #{new_autoencoder_forward.1} parent=11 // pred_region
          _
        $region20: #{new_autoencoder_forward.1} parent=11 // pred_fallthru
          _
        // Predicated region
        $region21: #{new_autoencoder_forward.1} parent=11 // pred_check
          %p263 = pneg %p111
        $region22: #{new_autoencoder_forward.1} parent=11 // pred_check_branch
          %265 = sbr.rel (%p263) target = $region24
        $region23: #{new_autoencoder_forward.1} parent=11 // pred_region
          _
        $region24: #{new_autoencoder_forward.1} parent=11 // pred_fallthru
          _
        // Predicated region
        $region25: #{new_autoencoder_forward.1} parent=11 // pred_check
          %p266 = pneg %p132
        $region26: #{new_autoencoder_forward.1} parent=11 // pred_check_branch
          %268 = sbr.rel (%p266) target = $region28
        $region27: #{new_autoencoder_forward.1} parent=11 // pred_region
          _
        $region28: #{new_autoencoder_forward.1} parent=11 // pred_fallthru
          _
        // Predicated region
        $region29: #{new_autoencoder_forward.1} parent=11 // pred_check
          %p269 = pneg %p153
        $region30: #{new_autoencoder_forward.1} parent=11 // pred_check_branch
          %271 = sbr.rel (%p269) target = $region32
        $region31: #{new_autoencoder_forward.1} parent=11 // pred_region
          _
        $region32: #{new_autoencoder_forward.1} parent=11 // pred_fallthru
          _
        // Predicated region
        $region33: #{new_autoencoder_forward.1} parent=11 // pred_check
          %p272 = pneg %p174
        $region34: #{new_autoencoder_forward.1} parent=11 // pred_check_branch
          %274 = sbr.rel (%p272) target = $region36
        $region35: #{new_autoencoder_forward.1} parent=11 // pred_region
          %276 = vsyncadd [#allocation6], 0
          %s277 = sshll.u32 %s6, 4
          %s278 = int_to_ptr.hbm [resolvable:$true] %s277
          %s279 = sshll.u32 [#allocation5], 4
          %s280 = int_to_ptr.vmem [resolvable:$true] %s279
          %285 = dma.hbm_to_vmem [thread:$0]  %s278, 1024, %s280, [#allocation6], 128, 128, 8
        $region36: #{new_autoencoder_forward.1} parent=11 // pred_fallthru
          _
        // Predicated region
        $region37: #{new_autoencoder_forward.1} parent=11 // pred_check
          %p286 = pneg %p195
        $region38: #{new_autoencoder_forward.1} parent=11 // pred_check_branch
          %288 = sbr.rel (%p286) target = $region40
        $region39: #{new_autoencoder_forward.1} parent=11 // pred_region
          _
        $region40: #{new_autoencoder_forward.1} parent=11 // pred_fallthru
          _
        // Predicated region
        $region41: #{new_autoencoder_forward.1} parent=11 // pred_check
          %p289 = pneg %p216
        $region42: #{new_autoencoder_forward.1} parent=11 // pred_check_branch
          %291 = sbr.rel (%p289) target = $region44
        $region43: #{new_autoencoder_forward.1} parent=11 // pred_region
          %293 = vsyncadd [#allocation6], 0
          %s295 = sshll.u32 %s8, 4
          %s296 = int_to_ptr.hbm [resolvable:$true] %s295
          %s297 = sshll.u32 [#allocation7], 4
          %s298 = int_to_ptr.vmem [resolvable:$true] %s297
          %300 = dma.hbm_to_vmem [thread:$0]  %s296, 896, %s298, [#allocation6]
        $region44: #{new_autoencoder_forward.1} parent=11 // pred_fallthru
          _
      $region12: #{new_autoencoder_forward.1} parent=5 // pred_fallthru
        _
      %p301 = scmp.lt.s32.totalorder %s22, 2
      // Predicated region
      $region45: #{new_autoencoder_forward.1} parent=5 // pred_check
        %p302 = pneg %p301
      $region46: #{new_autoencoder_forward.1} parent=5 // pred_check_branch
        %304 = sbr.rel (%p302) target = $region48
      $region47: #{new_autoencoder_forward.1} parent=5 // pred_region
        // Predicated region
        $region49: #{new_autoencoder_forward.1} parent=47 // pred_check
          %p305 = pneg %p42
        $region50: #{new_autoencoder_forward.1} parent=47 // pred_check_branch
          %307 = sbr.rel (%p305) target = $region52
        $region51: #{new_autoencoder_forward.1} parent=47 // pred_region
          %s308 = sand.u32 %s32, 1
          %s309 = scalar_lea.sflag [#allocation3], %s308
          %s310 = sand.u32 %s32, 1
          %s311 = smul.addr %s310, 224
          %s312 = scalar_lea.vmem [#allocation2], %s311
          %s313 = smul.u32 4, %s22
          %315 = vsyncadd %s309, 0
          %s316 = smul.addr %s313, 7
          %s317 = smul.addr %s316, 8
          %s318 = scalar_lea.hbm %s0, %s317
          %s319 = sshll.u32 %s318, 4
          %s320 = int_to_ptr.hbm [resolvable:$true] %s319
          %s321 = sshll.u32 %s312, 4
          %s322 = int_to_ptr.vmem [resolvable:$true] %s321
          %327 = dma.hbm_to_vmem [thread:$0]  %s320, 3584, %s322, %s309, 896, 896, 56
        $region52: #{new_autoencoder_forward.1} parent=47 // pred_fallthru
          _
      $region48: #{new_autoencoder_forward.1} parent=5 // pred_fallthru
        _
      %p328 = scmp.le.s32.totalorder 1, %s22
      %p329 = scmp.lt.s32.totalorder %s22, 3
      %p330 = pnand %p328, %p329
      %p331 = pneg %p330
      // Predicated region
      $region53: #{new_autoencoder_forward.1} parent=5 // pred_check
        _
      $region54: #{new_autoencoder_forward.1} parent=5 // pred_check_branch
        %333 = sbr.rel (%p330) target = $region56
      $region55: #{new_autoencoder_forward.1} parent=5 // pred_region
        %s334 = ssub.s32 %s22, 1
        %s335 = sand.u32 %s35, 1
        %s336 = scalar_lea.sflag [#allocation3], %s335
        %s337 = sand.u32 %s35, 1
        %s338 = smul.addr %s337, 224
        %s339 = scalar_lea.vmem [#allocation2], %s338
        // Predicated region
        $region57: #{new_autoencoder_forward.1} parent=55 // pred_check
          %p340 = pneg %p48
        $region58: #{new_autoencoder_forward.1} parent=55 // pred_check_branch
          %342 = sbr.rel (%p340) target = $region60
        $region59: #{new_autoencoder_forward.1} parent=55 // pred_region
          %344 = dma.done %s336, 3584
        $region60: #{new_autoencoder_forward.1} parent=55 // pred_fallthru
          _
        // Predicated region
        $region61: #{new_autoencoder_forward.1} parent=55 // pred_check
          %p345 = pneg %p174
        $region62: #{new_autoencoder_forward.1} parent=55 // pred_check_branch
          %347 = sbr.rel (%p345) target = $region64
        $region63: #{new_autoencoder_forward.1} parent=55 // pred_region
          %349 = dma.done [#allocation6], 1024
        $region64: #{new_autoencoder_forward.1} parent=55 // pred_fallthru
          _
        // Predicated region
        $region65: #{new_autoencoder_forward.1} parent=55 // pred_check
          %p350 = pneg %p216
        $region66: #{new_autoencoder_forward.1} parent=55 // pred_check_branch
          %352 = sbr.rel (%p350) target = $region68
        $region67: #{new_autoencoder_forward.1} parent=55 // pred_region
          %354 = dma.done [#allocation6], 896
        $region68: #{new_autoencoder_forward.1} parent=55 // pred_fallthru
          _
        %s355 = sand.u32 %s35, 1
        %s356 = scalar_lea.sflag [#allocation3], %s355
        %s357 = sand.u32 %s35, 1
        %s358 = smul.addr %s357, 224
        %s359 = scalar_lea.vmem [#allocation2], %s358
        %p360 = pneg %p48
        %p361 = pneg %p45
        %p362 = pneg %p69
        %p363 = pneg %p66
        %p364 = pneg %p90
        %p365 = pneg %p87
        %p366 = pneg %p111
        %p367 = pneg %p108
        %p368 = pneg %p132
        %p369 = pneg %p129
        %p370 = pneg %p153
        %p371 = pneg %p150
        %p372 = pneg %p174
        %p373 = pneg %p171
        %p374 = pneg %p195
        %p375 = pneg %p192
        %p376 = pneg %p216
        %p377 = pneg %p213
        %p378 = pneg %p242
        %p379 = pneg %p239
        %s380 = sand.u32 %s229, 1
        %s381 = scalar_lea.sflag [#allocation4], %s380
        %s382 = sand.u32 %s229, 1
        %s383 = smul.addr %s382, 224
        %s384 = scalar_lea.vmem [#allocation8], %s383
        %s385 = smul.u32 4, %s27
        %s386 = smul.u32 4, %s27
        %v387 = vld [vmem:[#allocation7] sm:$0xff]
        %v388 = vld [vmem:[#allocation7 + $0x8] sm:$0xff]
        %v389 = vld [vmem:[#allocation7 + $0x10] sm:$0xff]
        %v390 = vld [vmem:[#allocation7 + $0x18] sm:$0xff]
        %v391 = vld [vmem:[#allocation7 + $0x20] sm:$0xff]
        %v392 = vld [vmem:[#allocation7 + $0x28] sm:$0xff]
        %v393 = vld [vmem:[#allocation7 + $0x30] sm:$0xff]
        %v394 = vld [vmem:[%s339] sm:$0xff]
        %v395 = vld [vmem:[%s339 + $0x8] sm:$0xff]
        %v396 = vld [vmem:[%s339 + $0x10] sm:$0xff]
        %v397 = vld [vmem:[%s339 + $0x18] sm:$0xff]
        %v398 = vld [vmem:[%s339 + $0x20] sm:$0xff]
        %v399 = vld [vmem:[%s339 + $0x28] sm:$0xff]
        %v400 = vld [vmem:[%s339 + $0x30] sm:$0xff]
        %v401 = vld [vmem:[%s339 + $0x38] sm:$0xff]
        %v402 = vld [vmem:[%s339 + $0x40] sm:$0xff]
        %v403 = vld [vmem:[%s339 + $0x48] sm:$0xff]
        %v404 = vld [vmem:[%s339 + $0x50] sm:$0xff]
        %v405 = vld [vmem:[%s339 + $0x58] sm:$0xff]
        %v406 = vld [vmem:[%s339 + $0x60] sm:$0xff]
        %v407 = vld [vmem:[%s339 + $0x68] sm:$0xff]
        %v408 = vld [vmem:[%s339 + $0x70] sm:$0xff]
        %v409 = vld [vmem:[%s339 + $0x78] sm:$0xff]
        %v410 = vld [vmem:[%s339 + $0x80] sm:$0xff]
        %v411 = vld [vmem:[%s339 + $0x88] sm:$0xff]
        %v412 = vld [vmem:[%s339 + $0x90] sm:$0xff]
        %v413 = vld [vmem:[%s339 + $0x98] sm:$0xff]
        %v414 = vld [vmem:[%s339 + $0xa0] sm:$0xff]
        %v415 = vld [vmem:[%s339 + $0xa8] sm:$0xff]
        %v416 = vld [vmem:[%s339 + $0xb0] sm:$0xff]
        %v417 = vld [vmem:[%s339 + $0xb8] sm:$0xff]
        %v418 = vld [vmem:[%s339 + $0xc0] sm:$0xff]
        %v419 = vld [vmem:[%s339 + $0xc8] sm:$0xff]
        %v420 = vld [vmem:[%s339 + $0xd0] sm:$0xff]
        %v421 = vld [vmem:[%s339 + $0xd8] sm:$0xff]
        %v422 = vld [vmem:[%s1] sm:$0xff]
        %v423 = vld [vmem:[%s1 + $0x8] sm:$0xff]
        %v424 = vld [vmem:[%s1 + $0x10] sm:$0xff]
        %v425 = vld [vmem:[%s1 + $0x18] sm:$0xff]
        %v426 = vld [vmem:[%s1 + $0x20] sm:$0xff]
        %v427 = vld [vmem:[%s1 + $0x28] sm:$0xff]
        %v428 = vld [vmem:[%s1 + $0x30] sm:$0xff]
        %v429 = vld [vmem:[%s1 + $0x38] sm:$0xff]
        %v430 = vld [vmem:[%s1 + $0x40] sm:$0xff]
        %v431 = vld [vmem:[%s1 + $0x48] sm:$0xff]
        %v432 = vld [vmem:[%s1 + $0x50] sm:$0xff]
        %v433 = vld [vmem:[%s1 + $0x58] sm:$0xff]
        %v434 = vld [vmem:[%s1 + $0x60] sm:$0xff]
        %v435 = vld [vmem:[%s1 + $0x68] sm:$0xff]
        %v436 = vld [vmem:[%s1 + $0x70] sm:$0xff]
        %v437 = vld [vmem:[%s1 + $0x78] sm:$0xff]
        %v438 = vld [vmem:[%s1 + $0x80] sm:$0xff]
        %v439 = vld [vmem:[%s1 + $0x88] sm:$0xff]
        %v440 = vld [vmem:[%s1 + $0x90] sm:$0xff]
        %v441 = vld [vmem:[%s1 + $0x98] sm:$0xff]
        %v442 = vld [vmem:[%s1 + $0xa0] sm:$0xff]
        %v443 = vld [vmem:[%s1 + $0xa8] sm:$0xff]
        %v444 = vld [vmem:[%s1 + $0xb0] sm:$0xff]
        %v445 = vld [vmem:[%s1 + $0xb8] sm:$0xff]
        %v446 = vld [vmem:[%s1 + $0xc0] sm:$0xff]
        %v447 = vld [vmem:[%s1 + $0xc8] sm:$0xff]
        %v448 = vld [vmem:[%s1 + $0xd0] sm:$0xff]
        %v449 = vld [vmem:[%s1 + $0xd8] sm:$0xff]
        %v450 = vld [vmem:[%s1 + $0xe0] sm:$0xff]
        %v451 = vld [vmem:[%s1 + $0xe8] sm:$0xff]
        %v452 = vld [vmem:[%s1 + $0xf0] sm:$0xff]
        %v453 = vld [vmem:[%s1 + $0xf8] sm:$0xff]
        %v454 = vld [vmem:[%s1 + $0x100] sm:$0xff]
        %v455 = vld [vmem:[%s1 + $0x108] sm:$0xff]
        %v456 = vld [vmem:[%s1 + $0x110] sm:$0xff]
        %v457 = vld [vmem:[%s1 + $0x118] sm:$0xff]
        %v458 = vld [vmem:[%s1 + $0x120] sm:$0xff]
        %v459 = vld [vmem:[%s1 + $0x128] sm:$0xff]
        %v460 = vld [vmem:[%s1 + $0x130] sm:$0xff]
        %v461 = vld [vmem:[%s1 + $0x138] sm:$0xff]
        %v462 = vld [vmem:[%s1 + $0x140] sm:$0xff]
        %v463 = vld [vmem:[%s1 + $0x148] sm:$0xff]
        %v464 = vld [vmem:[%s1 + $0x150] sm:$0xff]
        %v465 = vld [vmem:[%s1 + $0x158] sm:$0xff]
        %v466 = vld [vmem:[%s1 + $0x160] sm:$0xff]
        %v467 = vld [vmem:[%s1 + $0x168] sm:$0xff]
        %v468 = vld [vmem:[%s1 + $0x170] sm:$0xff]
        %v469 = vld [vmem:[%s1 + $0x178] sm:$0xff]
        %v470 = vld [vmem:[%s1 + $0x180] sm:$0xff]
        %v471 = vld [vmem:[%s1 + $0x188] sm:$0xff]
        %v472 = vld [vmem:[%s1 + $0x190] sm:$0xff]
        %v473 = vld [vmem:[%s1 + $0x198] sm:$0xff]
        %v474 = vld [vmem:[%s1 + $0x1a0] sm:$0xff]
        %v475 = vld [vmem:[%s1 + $0x1a8] sm:$0xff]
        %v476 = vld [vmem:[%s1 + $0x1b0] sm:$0xff]
        %v477 = vld [vmem:[%s1 + $0x1b8] sm:$0xff]
        %v478 = vld [vmem:[%s1 + $0x1c0] sm:$0xff]
        %v479 = vld [vmem:[%s1 + $0x1c8] sm:$0xff]
        %v480 = vld [vmem:[%s1 + $0x1d0] sm:$0xff]
        %v481 = vld [vmem:[%s1 + $0x1d8] sm:$0xff]
        %v482 = vld [vmem:[%s1 + $0x1e0] sm:$0xff]
        %v483 = vld [vmem:[%s1 + $0x1e8] sm:$0xff]
        %v484 = vld [vmem:[%s1 + $0x1f0] sm:$0xff]
        %v485 = vld [vmem:[%s1 + $0x1f8] sm:$0xff]
        %v486 = vld [vmem:[%s1 + $0x200] sm:$0xff]
        %v487 = vld [vmem:[%s1 + $0x208] sm:$0xff]
        %v488 = vld [vmem:[%s1 + $0x210] sm:$0xff]
        %v489 = vld [vmem:[%s1 + $0x218] sm:$0xff]
        %v490 = vld [vmem:[%s1 + $0x220] sm:$0xff]
        %v491 = vld [vmem:[%s1 + $0x228] sm:$0xff]
        %v492 = vld [vmem:[%s1 + $0x230] sm:$0xff]
        %v493 = vld [vmem:[%s1 + $0x238] sm:$0xff]
        %v494 = vld [vmem:[%s1 + $0x240] sm:$0xff]
        %v495 = vld [vmem:[%s1 + $0x248] sm:$0xff]
        %v496 = vld [vmem:[%s1 + $0x250] sm:$0xff]
        %v497 = vld [vmem:[%s1 + $0x258] sm:$0xff]
        %v498 = vld [vmem:[%s1 + $0x260] sm:$0xff]
        %v499 = vld [vmem:[%s1 + $0x268] sm:$0xff]
        %v500 = vld [vmem:[%s1 + $0x270] sm:$0xff]
        %v501 = vld [vmem:[%s1 + $0x278] sm:$0xff]
        %v502 = vld [vmem:[%s1 + $0x280] sm:$0xff]
        %v503 = vld [vmem:[%s1 + $0x288] sm:$0xff]
        %v504 = vld [vmem:[%s1 + $0x290] sm:$0xff]
        %v505 = vld [vmem:[%s1 + $0x298] sm:$0xff]
        %v506 = vld [vmem:[%s1 + $0x2a0] sm:$0xff]
        %v507 = vld [vmem:[%s1 + $0x2a8] sm:$0xff]
        %v508 = vld [vmem:[%s1 + $0x2b0] sm:$0xff]
        %v509 = vld [vmem:[%s1 + $0x2b8] sm:$0xff]
        %v510 = vld [vmem:[%s1 + $0x2c0] sm:$0xff]
        %v511 = vld [vmem:[%s1 + $0x2c8] sm:$0xff]
        %v512 = vld [vmem:[%s1 + $0x2d0] sm:$0xff]
        %v513 = vld [vmem:[%s1 + $0x2d8] sm:$0xff]
        %v514 = vld [vmem:[%s1 + $0x2e0] sm:$0xff]
        %v515 = vld [vmem:[%s1 + $0x2e8] sm:$0xff]
        %v516 = vld [vmem:[%s1 + $0x2f0] sm:$0xff]
        %v517 = vld [vmem:[%s1 + $0x2f8] sm:$0xff]
        %v518 = vld [vmem:[%s1 + $0x300] sm:$0xff]
        %v519 = vld [vmem:[%s1 + $0x308] sm:$0xff]
        %v520 = vld [vmem:[%s1 + $0x310] sm:$0xff]
        %v521 = vld [vmem:[%s1 + $0x318] sm:$0xff]
        %v522 = vld [vmem:[%s1 + $0x320] sm:$0xff]
        %v523 = vld [vmem:[%s1 + $0x328] sm:$0xff]
        %v524 = vld [vmem:[%s1 + $0x330] sm:$0xff]
        %v525 = vld [vmem:[%s1 + $0x338] sm:$0xff]
        %v526 = vld [vmem:[%s1 + $0x340] sm:$0xff]
        %v527 = vld [vmem:[%s1 + $0x348] sm:$0xff]
        %v528 = vld [vmem:[%s1 + $0x350] sm:$0xff]
        %v529 = vld [vmem:[%s1 + $0x358] sm:$0xff]
        %v530 = vld [vmem:[%s1 + $0x360] sm:$0xff]
        %v531 = vld [vmem:[%s1 + $0x368] sm:$0xff]
        %v532 = vld [vmem:[%s1 + $0x370] sm:$0xff]
        %v533 = vld [vmem:[%s1 + $0x378] sm:$0xff]
        %v534 = vld [vmem:[%s1 + $0x380] sm:$0xff]
        %v535 = vld [vmem:[%s1 + $0x388] sm:$0xff]
        %v536 = vld [vmem:[%s1 + $0x390] sm:$0xff]
        %v537 = vld [vmem:[%s1 + $0x398] sm:$0xff]
        %v538 = vld [vmem:[%s1 + $0x3a0] sm:$0xff]
        %v539 = vld [vmem:[%s1 + $0x3a8] sm:$0xff]
        %v540 = vld [vmem:[%s1 + $0x3b0] sm:$0xff]
        %v541 = vld [vmem:[%s1 + $0x3b8] sm:$0xff]
        %v542 = vld [vmem:[%s1 + $0x3c0] sm:$0xff]
        %v543 = vld [vmem:[%s1 + $0x3c8] sm:$0xff]
        %v544 = vld [vmem:[%s1 + $0x3d0] sm:$0xff]
        %v545 = vld [vmem:[%s1 + $0x3d8] sm:$0xff]
        %v546 = vld [vmem:[%s1 + $0x3e0] sm:$0xff]
        %v547 = vld [vmem:[%s1 + $0x3e8] sm:$0xff]
        %v548 = vld [vmem:[%s1 + $0x3f0] sm:$0xff]
        %v549 = vld [vmem:[%s1 + $0x3f8] sm:$0xff]
        %v550 = vld [vmem:[%s1 + $0x400] sm:$0xff]
        %v551 = vld [vmem:[%s1 + $0x408] sm:$0xff]
        %v552 = vld [vmem:[%s1 + $0x410] sm:$0xff]
        %v553 = vld [vmem:[%s1 + $0x418] sm:$0xff]
        %v554 = vld [vmem:[%s1 + $0x420] sm:$0xff]
        %v555 = vld [vmem:[%s1 + $0x428] sm:$0xff]
        %v556 = vld [vmem:[%s1 + $0x430] sm:$0xff]
        %v557 = vld [vmem:[%s1 + $0x438] sm:$0xff]
        %v558 = vld [vmem:[%s1 + $0x440] sm:$0xff]
        %v559 = vld [vmem:[%s1 + $0x448] sm:$0xff]
        %v560 = vld [vmem:[%s1 + $0x450] sm:$0xff]
        %v561 = vld [vmem:[%s1 + $0x458] sm:$0xff]
        %v562 = vld [vmem:[%s1 + $0x460] sm:$0xff]
        %v563 = vld [vmem:[%s1 + $0x468] sm:$0xff]
        %v564 = vld [vmem:[%s1 + $0x470] sm:$0xff]
        %v565 = vld [vmem:[%s1 + $0x478] sm:$0xff]
        %v566 = vld [vmem:[%s1 + $0x480] sm:$0xff]
        %v567 = vld [vmem:[%s1 + $0x488] sm:$0xff]
        %v568 = vld [vmem:[%s1 + $0x490] sm:$0xff]
        %v569 = vld [vmem:[%s1 + $0x498] sm:$0xff]
        %v570 = vld [vmem:[%s1 + $0x4a0] sm:$0xff]
        %v571 = vld [vmem:[%s1 + $0x4a8] sm:$0xff]
        %v572 = vld [vmem:[%s1 + $0x4b0] sm:$0xff]
        %v573 = vld [vmem:[%s1 + $0x4b8] sm:$0xff]
        %v574 = vld [vmem:[%s1 + $0x4c0] sm:$0xff]
        %v575 = vld [vmem:[%s1 + $0x4c8] sm:$0xff]
        %v576 = vld [vmem:[%s1 + $0x4d0] sm:$0xff]
        %v577 = vld [vmem:[%s1 + $0x4d8] sm:$0xff]
        %v578 = vld [vmem:[%s1 + $0x4e0] sm:$0xff]
        %v579 = vld [vmem:[%s1 + $0x4e8] sm:$0xff]
        %v580 = vld [vmem:[%s1 + $0x4f0] sm:$0xff]
        %v581 = vld [vmem:[%s1 + $0x4f8] sm:$0xff]
        %v582 = vld [vmem:[%s1 + $0x500] sm:$0xff]
        %v583 = vld [vmem:[%s1 + $0x508] sm:$0xff]
        %v584 = vld [vmem:[%s1 + $0x510] sm:$0xff]
        %v585 = vld [vmem:[%s1 + $0x518] sm:$0xff]
        %v586 = vld [vmem:[%s1 + $0x520] sm:$0xff]
        %v587 = vld [vmem:[%s1 + $0x528] sm:$0xff]
        %v588 = vld [vmem:[%s1 + $0x530] sm:$0xff]
        %v589 = vld [vmem:[%s1 + $0x538] sm:$0xff]
        %v590 = vld [vmem:[%s1 + $0x540] sm:$0xff]
        %v591 = vld [vmem:[%s1 + $0x548] sm:$0xff]
        %v592 = vld [vmem:[%s1 + $0x550] sm:$0xff]
        %v593 = vld [vmem:[%s1 + $0x558] sm:$0xff]
        %v594 = vld [vmem:[%s1 + $0x560] sm:$0xff]
        %v595 = vld [vmem:[%s1 + $0x568] sm:$0xff]
        %v596 = vld [vmem:[%s1 + $0x570] sm:$0xff]
        %v597 = vld [vmem:[%s1 + $0x578] sm:$0xff]
        %v598 = vld [vmem:[%s1 + $0x580] sm:$0xff]
        %v599 = vld [vmem:[%s1 + $0x588] sm:$0xff]
        %v600 = vld [vmem:[%s1 + $0x590] sm:$0xff]
        %v601 = vld [vmem:[%s1 + $0x598] sm:$0xff]
        %v602 = vld [vmem:[%s1 + $0x5a0] sm:$0xff]
        %v603 = vld [vmem:[%s1 + $0x5a8] sm:$0xff]
        %v604 = vld [vmem:[%s1 + $0x5b0] sm:$0xff]
        %v605 = vld [vmem:[%s1 + $0x5b8] sm:$0xff]
        %v606 = vld [vmem:[%s1 + $0x5c0] sm:$0xff]
        %v607 = vld [vmem:[%s1 + $0x5c8] sm:$0xff]
        %v608 = vld [vmem:[%s1 + $0x5d0] sm:$0xff]
        %v609 = vld [vmem:[%s1 + $0x5d8] sm:$0xff]
        %v610 = vld [vmem:[%s1 + $0x5e0] sm:$0xff]
        %v611 = vld [vmem:[%s1 + $0x5e8] sm:$0xff]
        %v612 = vld [vmem:[%s1 + $0x5f0] sm:$0xff]
        %v613 = vld [vmem:[%s1 + $0x5f8] sm:$0xff]
        %v614 = vld [vmem:[%s1 + $0x600] sm:$0xff]
        %v615 = vld [vmem:[%s1 + $0x608] sm:$0xff]
        %v616 = vld [vmem:[%s1 + $0x610] sm:$0xff]
        %v617 = vld [vmem:[%s1 + $0x618] sm:$0xff]
        %v618 = vperm.slane %v387, 0
        %v619 = vperm.slane %v388, 0
        %vm620 = vcmask 130048
        %v622 = vsel %vm620, %v400, 0
        %v625 = vsel %vm620, %v407, 0
        %v628 = vsel %vm620, %v414, 0
        %v631 = vsel %vm620, %v421, 0
        %633 = vmatpush.msra.mxu0 %v452
        %634 = vmatpush.msra.mxu0 %v450
        %635 = vmatpush.msra.mxu0 %v448
        %636 = vmatpush.msra.mxu0 %v446
        %637 = vmatpush.msra.mxu0 %v444
        %638 = vmatpush.msra.mxu0 %v442
        %639 = vmatpush.msra.mxu0 %v440
        %640 = vmatpush.msra.mxu0 %v438
        %641 = vmatpush.msra.mxu0 %v436
        %642 = vmatpush.msra.mxu0 %v434
        %643 = vmatpush.msra.mxu0 %v432
        %644 = vmatpush.msra.mxu0 %v430
        %645 = vmatpush.msra.mxu0 %v428
        %646 = vmatpush.msra.mxu0 %v426
        %647 = vmatpush.msra.mxu0 %v424
        %648 = vmatpush.msra.mxu0 %v422
        %649 = vmatmul.f32.gmra.mxu0 %v394
        %v650 = vpop.f32.mrf.mxu0
        %v651 = vadd.f32 %v618, %v650
        %652 = vmatmul.f32.gmra.mxu0 %v401
        %v653 = vpop.f32.mrf.mxu0
        %v654 = vadd.f32 %v618, %v653
        %655 = vmatmul.f32.gmra.mxu0 %v408
        %v656 = vpop.f32.mrf.mxu0
        %v657 = vadd.f32 %v618, %v656
        %658 = vmatmul.f32.gmra.mxu0 %v415
        %v659 = vpop.f32.mrf.mxu0
        %v660 = vadd.f32 %v618, %v659
        %661 = vdwg.mxu0
        %662 = vmatpush.msra.mxu0 %v484
        %663 = vmatpush.msra.mxu0 %v482
        %664 = vmatpush.msra.mxu0 %v480
        %665 = vmatpush.msra.mxu0 %v478
        %666 = vmatpush.msra.mxu0 %v476
        %667 = vmatpush.msra.mxu0 %v474
        %668 = vmatpush.msra.mxu0 %v472
        %669 = vmatpush.msra.mxu0 %v470
        %670 = vmatpush.msra.mxu0 %v468
        %671 = vmatpush.msra.mxu0 %v466
        %672 = vmatpush.msra.mxu0 %v464
        %673 = vmatpush.msra.mxu0 %v462
        %674 = vmatpush.msra.mxu0 %v460
        %675 = vmatpush.msra.mxu0 %v458
        %676 = vmatpush.msra.mxu0 %v456
        %677 = vmatpush.msra.mxu0 %v454
        %678 = vmatmul.f32.gmra.mxu0 %v395
        %v679 = vpop.f32.mrf.mxu0
        %v680 = vadd.f32 %v651, %v679
        %681 = vmatmul.f32.gmra.mxu0 %v402
        %v682 = vpop.f32.mrf.mxu0
        %v683 = vadd.f32 %v654, %v682
        %684 = vmatmul.f32.gmra.mxu0 %v409
        %v685 = vpop.f32.mrf.mxu0
        %v686 = vadd.f32 %v657, %v685
        %687 = vmatmul.f32.gmra.mxu0 %v416
        %v688 = vpop.f32.mrf.mxu0
        %v689 = vadd.f32 %v660, %v688
        %690 = vdwg.mxu0
        %691 = vmatpush.msra.mxu0 %v516
        %692 = vmatpush.msra.mxu0 %v514
        %693 = vmatpush.msra.mxu0 %v512
        %694 = vmatpush.msra.mxu0 %v510
        %695 = vmatpush.msra.mxu0 %v508
        %696 = vmatpush.msra.mxu0 %v506
        %697 = vmatpush.msra.mxu0 %v504
        %698 = vmatpush.msra.mxu0 %v502
        %699 = vmatpush.msra.mxu0 %v500
        %700 = vmatpush.msra.mxu0 %v498
        %701 = vmatpush.msra.mxu0 %v496
        %702 = vmatpush.msra.mxu0 %v494
        %703 = vmatpush.msra.mxu0 %v492
        %704 = vmatpush.msra.mxu0 %v490
        %705 = vmatpush.msra.mxu0 %v488
        %706 = vmatpush.msra.mxu0 %v486
        %707 = vmatmul.f32.gmra.mxu0 %v396
        %v708 = vpop.f32.mrf.mxu0
        %v709 = vadd.f32 %v680, %v708
        %710 = vmatmul.f32.gmra.mxu0 %v403
        %v711 = vpop.f32.mrf.mxu0
        %v712 = vadd.f32 %v683, %v711
        %713 = vmatmul.f32.gmra.mxu0 %v410
        %v714 = vpop.f32.mrf.mxu0
        %v715 = vadd.f32 %v686, %v714
        %716 = vmatmul.f32.gmra.mxu0 %v417
        %v717 = vpop.f32.mrf.mxu0
        %v718 = vadd.f32 %v689, %v717
        %719 = vdwg.mxu0
        %720 = vmatpush.msra.mxu0 %v548
        %721 = vmatpush.msra.mxu0 %v546
        %722 = vmatpush.msra.mxu0 %v544
        %723 = vmatpush.msra.mxu0 %v542
        %724 = vmatpush.msra.mxu0 %v540
        %725 = vmatpush.msra.mxu0 %v538
        %726 = vmatpush.msra.mxu0 %v536
        %727 = vmatpush.msra.mxu0 %v534
        %728 = vmatpush.msra.mxu0 %v532
        %729 = vmatpush.msra.mxu0 %v530
        %730 = vmatpush.msra.mxu0 %v528
        %731 = vmatpush.msra.mxu0 %v526
        %732 = vmatpush.msra.mxu0 %v524
        %733 = vmatpush.msra.mxu0 %v522
        %734 = vmatpush.msra.mxu0 %v520
        %735 = vmatpush.msra.mxu0 %v518
        %736 = vmatmul.f32.gmra.mxu0 %v397
        %v737 = vpop.f32.mrf.mxu0
        %v738 = vadd.f32 %v709, %v737
        %739 = vmatmul.f32.gmra.mxu0 %v404
        %v740 = vpop.f32.mrf.mxu0
        %v741 = vadd.f32 %v712, %v740
        %742 = vmatmul.f32.gmra.mxu0 %v411
        %v743 = vpop.f32.mrf.mxu0
        %v744 = vadd.f32 %v715, %v743
        %745 = vmatmul.f32.gmra.mxu0 %v418
        %v746 = vpop.f32.mrf.mxu0
        %v747 = vadd.f32 %v718, %v746
        %748 = vdwg.mxu0
        %749 = vmatpush.msra.mxu0 %v580
        %750 = vmatpush.msra.mxu0 %v578
        %751 = vmatpush.msra.mxu0 %v576
        %752 = vmatpush.msra.mxu0 %v574
        %753 = vmatpush.msra.mxu0 %v572
        %754 = vmatpush.msra.mxu0 %v570
        %755 = vmatpush.msra.mxu0 %v568
        %756 = vmatpush.msra.mxu0 %v566
        %757 = vmatpush.msra.mxu0 %v564
        %758 = vmatpush.msra.mxu0 %v562
        %759 = vmatpush.msra.mxu0 %v560
        %760 = vmatpush.msra.mxu0 %v558
        %761 = vmatpush.msra.mxu0 %v556
        %762 = vmatpush.msra.mxu0 %v554
        %763 = vmatpush.msra.mxu0 %v552
        %764 = vmatpush.msra.mxu0 %v550
        %765 = vmatmul.f32.gmra.mxu0 %v398
        %v766 = vpop.f32.mrf.mxu0
        %v767 = vadd.f32 %v738, %v766
        %768 = vmatmul.f32.gmra.mxu0 %v405
        %v769 = vpop.f32.mrf.mxu0
        %v770 = vadd.f32 %v741, %v769
        %771 = vmatmul.f32.gmra.mxu0 %v412
        %v772 = vpop.f32.mrf.mxu0
        %v773 = vadd.f32 %v744, %v772
        %774 = vmatmul.f32.gmra.mxu0 %v419
        %v775 = vpop.f32.mrf.mxu0
        %v776 = vadd.f32 %v747, %v775
        %777 = vdwg.mxu0
        %778 = vmatpush.msra.mxu0 %v612
        %779 = vmatpush.msra.mxu0 %v610
        %780 = vmatpush.msra.mxu0 %v608
        %781 = vmatpush.msra.mxu0 %v606
        %782 = vmatpush.msra.mxu0 %v604
        %783 = vmatpush.msra.mxu0 %v602
        %784 = vmatpush.msra.mxu0 %v600
        %785 = vmatpush.msra.mxu0 %v598
        %786 = vmatpush.msra.mxu0 %v596
        %787 = vmatpush.msra.mxu0 %v594
        %788 = vmatpush.msra.mxu0 %v592
        %789 = vmatpush.msra.mxu0 %v590
        %790 = vmatpush.msra.mxu0 %v588
        %791 = vmatpush.msra.mxu0 %v586
        %792 = vmatpush.msra.mxu0 %v584
        %793 = vmatpush.msra.mxu0 %v582
        %794 = vmatmul.f32.gmra.mxu0 %v399
        %v795 = vpop.f32.mrf.mxu0
        %v796 = vadd.f32 %v767, %v795
        %797 = vmatmul.f32.gmra.mxu0 %v406
        %v798 = vpop.f32.mrf.mxu0
        %v799 = vadd.f32 %v770, %v798
        %800 = vmatmul.f32.gmra.mxu0 %v413
        %v801 = vpop.f32.mrf.mxu0
        %v802 = vadd.f32 %v773, %v801
        %803 = vmatmul.f32.gmra.mxu0 %v420
        %v804 = vpop.f32.mrf.mxu0
        %v805 = vadd.f32 %v776, %v804
        %806 = vdwg.mxu0
        %807 = vmatpush.msra.mxu0 0.0
        %808 = vmatpush.msra.mxu0 0.0
        %809 = vmatpush.msra.mxu0 0.0
        %810 = vmatpush.msra.mxu0 0.0
        %811 = vmatpush.msra.mxu0 0.0
        %812 = vmatpush.msra.mxu0 0.0
        %813 = vmatpush.msra.mxu0 0.0
        %814 = vmatpush.msra.mxu0 0.0
        %815 = vmatpush.msra.mxu0 0.0
        %816 = vmatpush.msra.mxu0 0.0
        %817 = vmatpush.msra.mxu0 0.0
        %818 = vmatpush.msra.mxu0 0.0
        %819 = vmatpush.msra.mxu0 0.0
        %820 = vmatpush.msra.mxu0 0.0
        %821 = vmatpush.msra.mxu0 %v616
        %822 = vmatpush.msra.mxu0 %v614
        %823 = vmatmul.f32.gmra.mxu0 %v622
        %v824 = vpop.f32.mrf.mxu0
        %v825 = vadd.f32 %v796, %v824
        %826 = vmatmul.f32.gmra.mxu0 %v625
        %v827 = vpop.f32.mrf.mxu0
        %v828 = vadd.f32 %v799, %v827
        %829 = vmatmul.f32.gmra.mxu0 %v628
        %v830 = vpop.f32.mrf.mxu0
        %v831 = vadd.f32 %v802, %v830
        %832 = vmatmul.f32.gmra.mxu0 %v631
        %v833 = vpop.f32.mrf.mxu0
        %v834 = vadd.f32 %v805, %v833
        %835 = vdwg.mxu0
        %836 = vmatpush.msra.mxu0 %v453
        %837 = vmatpush.msra.mxu0 %v451
        %838 = vmatpush.msra.mxu0 %v449
        %839 = vmatpush.msra.mxu0 %v447
        %840 = vmatpush.msra.mxu0 %v445
        %841 = vmatpush.msra.mxu0 %v443
        %842 = vmatpush.msra.mxu0 %v441
        %843 = vmatpush.msra.mxu0 %v439
        %844 = vmatpush.msra.mxu0 %v437
        %845 = vmatpush.msra.mxu0 %v435
        %846 = vmatpush.msra.mxu0 %v433
        %847 = vmatpush.msra.mxu0 %v431
        %848 = vmatpush.msra.mxu0 %v429
        %849 = vmatpush.msra.mxu0 %v427
        %850 = vmatpush.msra.mxu0 %v425
        %851 = vmatpush.msra.mxu0 %v423
        %852 = vmatmul.f32.gmra.mxu0 %v394
        %v853 = vpop.f32.mrf.mxu0
        %v854 = vadd.f32 %v619, %v853
        %855 = vmatmul.f32.gmra.mxu0 %v401
        %v856 = vpop.f32.mrf.mxu0
        %v857 = vadd.f32 %v619, %v856
        %858 = vmatmul.f32.gmra.mxu0 %v408
        %v859 = vpop.f32.mrf.mxu0
        %v860 = vadd.f32 %v619, %v859
        %861 = vmatmul.f32.gmra.mxu0 %v415
        %v862 = vpop.f32.mrf.mxu0
        %v863 = vadd.f32 %v619, %v862
        %864 = vdwg.mxu0
        %865 = vmatpush.msra.mxu0 %v485
        %866 = vmatpush.msra.mxu0 %v483
        %867 = vmatpush.msra.mxu0 %v481
        %868 = vmatpush.msra.mxu0 %v479
        %869 = vmatpush.msra.mxu0 %v477
        %870 = vmatpush.msra.mxu0 %v475
        %871 = vmatpush.msra.mxu0 %v473
        %872 = vmatpush.msra.mxu0 %v471
        %873 = vmatpush.msra.mxu0 %v469
        %874 = vmatpush.msra.mxu0 %v467
        %875 = vmatpush.msra.mxu0 %v465
        %876 = vmatpush.msra.mxu0 %v463
        %877 = vmatpush.msra.mxu0 %v461
        %878 = vmatpush.msra.mxu0 %v459
        %879 = vmatpush.msra.mxu0 %v457
        %880 = vmatpush.msra.mxu0 %v455
        %881 = vmatmul.f32.gmra.mxu0 %v395
        %v882 = vpop.f32.mrf.mxu0
        %v883 = vadd.f32 %v854, %v882
        %884 = vmatmul.f32.gmra.mxu0 %v402
        %v885 = vpop.f32.mrf.mxu0
        %v886 = vadd.f32 %v857, %v885
        %887 = vmatmul.f32.gmra.mxu0 %v409
        %v888 = vpop.f32.mrf.mxu0
        %v889 = vadd.f32 %v860, %v888
        %890 = vmatmul.f32.gmra.mxu0 %v416
        %v891 = vpop.f32.mrf.mxu0
        %v892 = vadd.f32 %v863, %v891
        %893 = vdwg.mxu0
        %894 = vmatpush.msra.mxu0 %v517
        %895 = vmatpush.msra.mxu0 %v515
        %896 = vmatpush.msra.mxu0 %v513
        %897 = vmatpush.msra.mxu0 %v511
        %898 = vmatpush.msra.mxu0 %v509
        %899 = vmatpush.msra.mxu0 %v507
        %900 = vmatpush.msra.mxu0 %v505
        %901 = vmatpush.msra.mxu0 %v503
        %902 = vmatpush.msra.mxu0 %v501
        %903 = vmatpush.msra.mxu0 %v499
        %904 = vmatpush.msra.mxu0 %v497
        %905 = vmatpush.msra.mxu0 %v495
        %906 = vmatpush.msra.mxu0 %v493
        %907 = vmatpush.msra.mxu0 %v491
        %908 = vmatpush.msra.mxu0 %v489
        %909 = vmatpush.msra.mxu0 %v487
        %910 = vmatmul.f32.gmra.mxu0 %v396
        %v911 = vpop.f32.mrf.mxu0
        %v912 = vadd.f32 %v883, %v911
        %913 = vmatmul.f32.gmra.mxu0 %v403
        %v914 = vpop.f32.mrf.mxu0
        %v915 = vadd.f32 %v886, %v914
        %916 = vmatmul.f32.gmra.mxu0 %v410
        %v917 = vpop.f32.mrf.mxu0
        %v918 = vadd.f32 %v889, %v917
        %919 = vmatmul.f32.gmra.mxu0 %v417
        %v920 = vpop.f32.mrf.mxu0
        %v921 = vadd.f32 %v892, %v920
        %922 = vdwg.mxu0
        %923 = vmatpush.msra.mxu0 %v549
        %924 = vmatpush.msra.mxu0 %v547
        %925 = vmatpush.msra.mxu0 %v545
        %926 = vmatpush.msra.mxu0 %v543
        %927 = vmatpush.msra.mxu0 %v541
        %928 = vmatpush.msra.mxu0 %v539
        %929 = vmatpush.msra.mxu0 %v537
        %930 = vmatpush.msra.mxu0 %v535
        %931 = vmatpush.msra.mxu0 %v533
        %932 = vmatpush.msra.mxu0 %v531
        %933 = vmatpush.msra.mxu0 %v529
        %934 = vmatpush.msra.mxu0 %v527
        %935 = vmatpush.msra.mxu0 %v525
        %936 = vmatpush.msra.mxu0 %v523
        %937 = vmatpush.msra.mxu0 %v521
        %938 = vmatpush.msra.mxu0 %v519
        %939 = vmatmul.f32.gmra.mxu0 %v397
        %v940 = vpop.f32.mrf.mxu0
        %v941 = vadd.f32 %v912, %v940
        %942 = vmatmul.f32.gmra.mxu0 %v404
        %v943 = vpop.f32.mrf.mxu0
        %v944 = vadd.f32 %v915, %v943
        %945 = vmatmul.f32.gmra.mxu0 %v411
        %v946 = vpop.f32.mrf.mxu0
        %v947 = vadd.f32 %v918, %v946
        %948 = vmatmul.f32.gmra.mxu0 %v418
        %v949 = vpop.f32.mrf.mxu0
        %v950 = vadd.f32 %v921, %v949
        %951 = vdwg.mxu0
        %952 = vmatpush.msra.mxu0 %v581
        %953 = vmatpush.msra.mxu0 %v579
        %954 = vmatpush.msra.mxu0 %v577
        %955 = vmatpush.msra.mxu0 %v575
        %956 = vmatpush.msra.mxu0 %v573
        %957 = vmatpush.msra.mxu0 %v571
        %958 = vmatpush.msra.mxu0 %v569
        %959 = vmatpush.msra.mxu0 %v567
        %960 = vmatpush.msra.mxu0 %v565
        %961 = vmatpush.msra.mxu0 %v563
        %962 = vmatpush.msra.mxu0 %v561
        %963 = vmatpush.msra.mxu0 %v559
        %964 = vmatpush.msra.mxu0 %v557
        %965 = vmatpush.msra.mxu0 %v555
        %966 = vmatpush.msra.mxu0 %v553
        %967 = vmatpush.msra.mxu0 %v551
        %968 = vmatmul.f32.gmra.mxu0 %v398
        %v969 = vpop.f32.mrf.mxu0
        %v970 = vadd.f32 %v941, %v969
        %971 = vmatmul.f32.gmra.mxu0 %v405
        %v972 = vpop.f32.mrf.mxu0
        %v973 = vadd.f32 %v944, %v972
        %974 = vmatmul.f32.gmra.mxu0 %v412
        %v975 = vpop.f32.mrf.mxu0
        %v976 = vadd.f32 %v947, %v975
        %977 = vmatmul.f32.gmra.mxu0 %v419
        %v978 = vpop.f32.mrf.mxu0
        %v979 = vadd.f32 %v950, %v978
        %980 = vdwg.mxu0
        %981 = vmatpush.msra.mxu0 %v613
        %982 = vmatpush.msra.mxu0 %v611
        %983 = vmatpush.msra.mxu0 %v609
        %984 = vmatpush.msra.mxu0 %v607
        %985 = vmatpush.msra.mxu0 %v605
        %986 = vmatpush.msra.mxu0 %v603
        %987 = vmatpush.msra.mxu0 %v601
        %988 = vmatpush.msra.mxu0 %v599
        %989 = vmatpush.msra.mxu0 %v597
        %990 = vmatpush.msra.mxu0 %v595
        %991 = vmatpush.msra.mxu0 %v593
        %992 = vmatpush.msra.mxu0 %v591
        %993 = vmatpush.msra.mxu0 %v589
        %994 = vmatpush.msra.mxu0 %v587
        %995 = vmatpush.msra.mxu0 %v585
        %996 = vmatpush.msra.mxu0 %v583
        %997 = vmatmul.f32.gmra.mxu0 %v399
        %v998 = vpop.f32.mrf.mxu0
        %v999 = vadd.f32 %v970, %v998
        %1000 = vmatmul.f32.gmra.mxu0 %v406
        %v1001 = vpop.f32.mrf.mxu0
        %v1002 = vadd.f32 %v973, %v1001
        %1003 = vmatmul.f32.gmra.mxu0 %v413
        %v1004 = vpop.f32.mrf.mxu0
        %v1005 = vadd.f32 %v976, %v1004
        %1006 = vmatmul.f32.gmra.mxu0 %v420
        %v1007 = vpop.f32.mrf.mxu0
        %v1008 = vadd.f32 %v979, %v1007
        %1009 = vdwg.mxu0
        %1010 = vmatpush.msra.mxu0 0.0
        %1011 = vmatpush.msra.mxu0 0.0
        %1012 = vmatpush.msra.mxu0 0.0
        %1013 = vmatpush.msra.mxu0 0.0
        %1014 = vmatpush.msra.mxu0 0.0
        %1015 = vmatpush.msra.mxu0 0.0
        %1016 = vmatpush.msra.mxu0 0.0
        %1017 = vmatpush.msra.mxu0 0.0
        %1018 = vmatpush.msra.mxu0 0.0
        %1019 = vmatpush.msra.mxu0 0.0
        %1020 = vmatpush.msra.mxu0 0.0
        %1021 = vmatpush.msra.mxu0 0.0
        %1022 = vmatpush.msra.mxu0 0.0
        %1023 = vmatpush.msra.mxu0 0.0
        %1024 = vmatpush.msra.mxu0 %v617
        %1025 = vmatpush.msra.mxu0 %v615
        %1026 = vmatmul.f32.gmra.mxu0 %v622
        %v1027 = vpop.f32.mrf.mxu0
        %v1028 = vadd.f32 %v999, %v1027
        %1029 = vmatmul.f32.gmra.mxu0 %v625
        %v1030 = vpop.f32.mrf.mxu0
        %v1031 = vadd.f32 %v1002, %v1030
        %1032 = vmatmul.f32.gmra.mxu0 %v628
        %v1033 = vpop.f32.mrf.mxu0
        %v1034 = vadd.f32 %v1005, %v1033
        %1035 = vmatmul.f32.gmra.mxu0 %v631
        %v1036 = vpop.f32.mrf.mxu0
        %v1037 = vadd.f32 %v1008, %v1036
        %1038 = vdwg.mxu0
        %v1039 = vmax.f32 %v825, 0.0
        %v1040 = vmax.f32 %v1028, 0.0
        %v1041 = vmax.f32 %v828, 0.0
        %v1042 = vmax.f32 %v1031, 0.0
        %v1043 = vmax.f32 %v831, 0.0
        %v1044 = vmax.f32 %v1034, 0.0
        %v1045 = vmax.f32 %v834, 0.0
        %v1046 = vmax.f32 %v1037, 0.0
        %v1047 = vld [vmem:[%s2] sm:$0xff]
        %v1048 = vld [vmem:[%s2 + $0x8] sm:$0xff]
        %v1049 = vld [vmem:[%s2 + $0x10] sm:$0xff]
        %v1050 = vld [vmem:[%s2 + $0x18] sm:$0xff]
        %v1051 = vld [vmem:[%s2 + $0x20] sm:$0xff]
        %v1052 = vld [vmem:[%s2 + $0x28] sm:$0xff]
        %v1053 = vld [vmem:[%s2 + $0x30] sm:$0xff]
        %v1054 = vld [vmem:[%s2 + $0x38] sm:$0xff]
        %v1055 = vld [vmem:[%s2 + $0x40] sm:$0xff]
        %v1056 = vld [vmem:[%s2 + $0x48] sm:$0xff]
        %v1057 = vld [vmem:[%s2 + $0x50] sm:$0xff]
        %v1058 = vld [vmem:[%s2 + $0x58] sm:$0xff]
        %v1059 = vld [vmem:[%s2 + $0x60] sm:$0xff]
        %v1060 = vld [vmem:[%s2 + $0x68] sm:$0xff]
        %v1061 = vld [vmem:[%s2 + $0x70] sm:$0xff]
        %v1062 = vld [vmem:[%s2 + $0x78] sm:$0xff]
        %v1063 = vld [vmem:[%s2 + $0x80] sm:$0xff]
        %v1064 = vld [vmem:[%s2 + $0x88] sm:$0xff]
        %v1065 = vld [vmem:[%s2 + $0x90] sm:$0xff]
        %v1066 = vld [vmem:[%s2 + $0x98] sm:$0xff]
        %v1067 = vld [vmem:[%s2 + $0xa0] sm:$0xff]
        %v1068 = vld [vmem:[%s2 + $0xa8] sm:$0xff]
        %v1069 = vld [vmem:[%s2 + $0xb0] sm:$0xff]
        %v1070 = vld [vmem:[%s2 + $0xb8] sm:$0xff]
        %v1071 = vld [vmem:[%s2 + $0xc0] sm:$0xff]
        %v1072 = vld [vmem:[%s2 + $0xc8] sm:$0xff]
        %v1073 = vld [vmem:[%s2 + $0xd0] sm:$0xff]
        %v1074 = vld [vmem:[%s2 + $0xd8] sm:$0xff]
        %v1075 = vld [vmem:[%s2 + $0xe0] sm:$0xff]
        %v1076 = vld [vmem:[%s2 + $0xe8] sm:$0xff]
        %v1077 = vld [vmem:[%s2 + $0xf0] sm:$0xff]
        %v1078 = vld [vmem:[%s2 + $0xf8] sm:$0xff]
        %v1079 = vperm.slane %v387, 1
        %1080 = vmatpush.msra.mxu0 %v1062
        %1081 = vmatpush.msra.mxu0 %v1061
        %1082 = vmatpush.msra.mxu0 %v1060
        %1083 = vmatpush.msra.mxu0 %v1059
        %1084 = vmatpush.msra.mxu0 %v1058
        %1085 = vmatpush.msra.mxu0 %v1057
        %1086 = vmatpush.msra.mxu0 %v1056
        %1087 = vmatpush.msra.mxu0 %v1055
        %1088 = vmatpush.msra.mxu0 %v1054
        %1089 = vmatpush.msra.mxu0 %v1053
        %1090 = vmatpush.msra.mxu0 %v1052
        %1091 = vmatpush.msra.mxu0 %v1051
        %1092 = vmatpush.msra.mxu0 %v1050
        %1093 = vmatpush.msra.mxu0 %v1049
        %1094 = vmatpush.msra.mxu0 %v1048
        %1095 = vmatpush.msra.mxu0 %v1047
        %1096 = vmatmul.f32.gmra.mxu0 %v1039
        %v1097 = vpop.f32.mrf.mxu0
        %v1098 = vadd.f32 %v1079, %v1097
        %1099 = vmatmul.f32.gmra.mxu0 %v1041
        %v1100 = vpop.f32.mrf.mxu0
        %v1101 = vadd.f32 %v1079, %v1100
        %1102 = vmatmul.f32.gmra.mxu0 %v1043
        %v1103 = vpop.f32.mrf.mxu0
        %v1104 = vadd.f32 %v1079, %v1103
        %1105 = vmatmul.f32.gmra.mxu0 %v1045
        %v1106 = vpop.f32.mrf.mxu0
        %v1107 = vadd.f32 %v1079, %v1106
        %1108 = vdwg.mxu0
        %1109 = vmatpush.msra.mxu0 %v1078
        %1110 = vmatpush.msra.mxu0 %v1077
        %1111 = vmatpush.msra.mxu0 %v1076
        %1112 = vmatpush.msra.mxu0 %v1075
        %1113 = vmatpush.msra.mxu0 %v1074
        %1114 = vmatpush.msra.mxu0 %v1073
        %1115 = vmatpush.msra.mxu0 %v1072
        %1116 = vmatpush.msra.mxu0 %v1071
        %1117 = vmatpush.msra.mxu0 %v1070
        %1118 = vmatpush.msra.mxu0 %v1069
        %1119 = vmatpush.msra.mxu0 %v1068
        %1120 = vmatpush.msra.mxu0 %v1067
        %1121 = vmatpush.msra.mxu0 %v1066
        %1122 = vmatpush.msra.mxu0 %v1065
        %1123 = vmatpush.msra.mxu0 %v1064
        %1124 = vmatpush.msra.mxu0 %v1063
        %1125 = vmatmul.f32.gmra.mxu0 %v1040
        %v1126 = vpop.f32.mrf.mxu0
        %v1127 = vadd.f32 %v1098, %v1126
        %1128 = vmatmul.f32.gmra.mxu0 %v1042
        %v1129 = vpop.f32.mrf.mxu0
        %v1130 = vadd.f32 %v1101, %v1129
        %1131 = vmatmul.f32.gmra.mxu0 %v1044
        %v1132 = vpop.f32.mrf.mxu0
        %v1133 = vadd.f32 %v1104, %v1132
        %1134 = vmatmul.f32.gmra.mxu0 %v1046
        %v1135 = vpop.f32.mrf.mxu0
        %v1136 = vadd.f32 %v1107, %v1135
        %1137 = vdwg.mxu0
        %v1138 = vmax.f32 %v1127, 0.0
        %v1139 = vmax.f32 %v1130, 0.0
        %v1140 = vmax.f32 %v1133, 0.0
        %v1141 = vmax.f32 %v1136, 0.0
        %v1142 = vld [vmem:[%s3] sm:$0xff]
        %v1143 = vld [vmem:[%s3 + $0x8] sm:$0xff]
        %v1144 = vld [vmem:[%s3 + $0x10] sm:$0xff]
        %v1145 = vld [vmem:[%s3 + $0x18] sm:$0xff]
        %v1146 = vld [vmem:[%s3 + $0x20] sm:$0xff]
        %v1147 = vld [vmem:[%s3 + $0x28] sm:$0xff]
        %v1148 = vld [vmem:[%s3 + $0x30] sm:$0xff]
        %v1149 = vld [vmem:[%s3 + $0x38] sm:$0xff]
        %v1150 = vld [vmem:[%s3 + $0x40] sm:$0xff]
        %v1151 = vld [vmem:[%s3 + $0x48] sm:$0xff]
        %v1152 = vld [vmem:[%s3 + $0x50] sm:$0xff]
        %v1153 = vld [vmem:[%s3 + $0x58] sm:$0xff]
        %v1154 = vld [vmem:[%s3 + $0x60] sm:$0xff]
        %v1155 = vld [vmem:[%s3 + $0x68] sm:$0xff]
        %v1156 = vld [vmem:[%s3 + $0x70] sm:$0xff]
        %v1157 = vld [vmem:[%s3 + $0x78] sm:$0xff]
        %v1158 = vperm.slane %v387, 2
        %1159 = vmatpush.msra.mxu0 %v1157
        %1160 = vmatpush.msra.mxu0 %v1156
        %1161 = vmatpush.msra.mxu0 %v1155
        %1162 = vmatpush.msra.mxu0 %v1154
        %1163 = vmatpush.msra.mxu0 %v1153
        %1164 = vmatpush.msra.mxu0 %v1152
        %1165 = vmatpush.msra.mxu0 %v1151
        %1166 = vmatpush.msra.mxu0 %v1150
        %1167 = vmatpush.msra.mxu0 %v1149
        %1168 = vmatpush.msra.mxu0 %v1148
        %1169 = vmatpush.msra.mxu0 %v1147
        %1170 = vmatpush.msra.mxu0 %v1146
        %1171 = vmatpush.msra.mxu0 %v1145
        %1172 = vmatpush.msra.mxu0 %v1144
        %1173 = vmatpush.msra.mxu0 %v1143
        %1174 = vmatpush.msra.mxu0 %v1142
        %1175 = vmatmul.f32.gmra.mxu0 %v1138
        %v1176 = vpop.f32.mrf.mxu0
        %v1177 = vadd.f32 %v1158, %v1176
        %1178 = vmatmul.f32.gmra.mxu0 %v1139
        %v1179 = vpop.f32.mrf.mxu0
        %v1180 = vadd.f32 %v1158, %v1179
        %1181 = vmatmul.f32.gmra.mxu0 %v1140
        %v1182 = vpop.f32.mrf.mxu0
        %v1183 = vadd.f32 %v1158, %v1182
        %1184 = vmatmul.f32.gmra.mxu0 %v1141
        %v1185 = vpop.f32.mrf.mxu0
        %v1186 = vadd.f32 %v1158, %v1185
        %1187 = vdwg.mxu0
        %v1188 = vmax.f32 %v1177, 0.0
        %v1189 = vmax.f32 %v1180, 0.0
        %v1190 = vmax.f32 %v1183, 0.0
        %v1191 = vmax.f32 %v1186, 0.0
        %v1192 = vld [vmem:[%s4] sm:$0xff]
        %v1193 = vld [vmem:[%s4 + $0x8] sm:$0xff]
        %v1194 = vld [vmem:[%s4 + $0x10] sm:$0xff]
        %v1195 = vperm.slane %v387, 3
        %vm1196 = vcmask 195584
        %v1198 = vsel %vm1196, %v1188, 0
        %v1201 = vsel %vm1196, %v1189, 0
        %v1204 = vsel %vm1196, %v1190, 0
        %v1207 = vsel %vm1196, %v1191, 0
        %1209 = vmatpush.msra.mxu0 0.0
        %1210 = vmatpush.msra.mxu0 0.0
        %1211 = vmatpush.msra.mxu0 0.0
        %1212 = vmatpush.msra.mxu0 0.0
        %1213 = vmatpush.msra.mxu0 0.0
        %1214 = vmatpush.msra.mxu0 0.0
        %1215 = vmatpush.msra.mxu0 0.0
        %1216 = vmatpush.msra.mxu0 0.0
        %1217 = vmatpush.msra.mxu0 0.0
        %1218 = vmatpush.msra.mxu0 0.0
        %1219 = vmatpush.msra.mxu0 0.0
        %1220 = vmatpush.msra.mxu0 0.0
        %1221 = vmatpush.msra.mxu0 0.0
        %1222 = vmatpush.msra.mxu0 %v1194
        %1223 = vmatpush.msra.mxu0 %v1193
        %1224 = vmatpush.msra.mxu0 %v1192
        %1225 = vmatmul.f32.gmra.mxu0 %v1198
        %v1226 = vpop.f32.mrf.mxu0
        %v1227 = vadd.f32 %v1195, %v1226
        %1228 = vmatmul.f32.gmra.mxu0 %v1201
        %v1229 = vpop.f32.mrf.mxu0
        %v1230 = vadd.f32 %v1195, %v1229
        %1231 = vmatmul.f32.gmra.mxu0 %v1204
        %v1232 = vpop.f32.mrf.mxu0
        %v1233 = vadd.f32 %v1195, %v1232
        %1234 = vmatmul.f32.gmra.mxu0 %v1207
        %v1235 = vpop.f32.mrf.mxu0
        %v1236 = vadd.f32 %v1195, %v1235
        %1237 = vdwg.mxu0
        %v1238 = vmax.f32 %v1227, 0.0
        %v1239 = vmax.f32 %v1230, 0.0
        %v1240 = vmax.f32 %v1233, 0.0
        %v1241 = vmax.f32 %v1236, 0.0
        %v1242 = vld [vmem:[%s5] sm:$0xff]
        %v1243 = vld [vmem:[%s5 + $0x8] sm:$0xf]
        %v1244 = vperm.slane %v387, 4
        %vm1245 = vcmask 97280
        %v1247 = vsel %vm1245, %v1238, 0
        %v1250 = vsel %vm1245, %v1239, 0
        %v1253 = vsel %vm1245, %v1240, 0
        %v1256 = vsel %vm1245, %v1241, 0
        %vm1258 = vcmask 1043456
        %v1260 = vsel %vm1258, %v1243, 0
        %1262 = vmatpush.msra.mxu0 0.0
        %1263 = vmatpush.msra.mxu0 0.0
        %1264 = vmatpush.msra.mxu0 0.0
        %1265 = vmatpush.msra.mxu0 0.0
        %1266 = vmatpush.msra.mxu0 0.0
        %1267 = vmatpush.msra.mxu0 0.0
        %1268 = vmatpush.msra.mxu0 0.0
        %1269 = vmatpush.msra.mxu0 0.0
        %1270 = vmatpush.msra.mxu0 0.0
        %1271 = vmatpush.msra.mxu0 0.0
        %1272 = vmatpush.msra.mxu0 0.0
        %1273 = vmatpush.msra.mxu0 0.0
        %1274 = vmatpush.msra.mxu0 0.0
        %1275 = vmatpush.msra.mxu0 0.0
        %1276 = vmatpush.msra.mxu0 %v1260
        %1277 = vmatpush.msra.mxu0 %v1242
        %1278 = vmatmul.f32.gmra.mxu0 %v1247
        %v1279 = vpop.f32.mrf.mxu0
        %v1280 = vadd.f32 %v1244, %v1279
        %1281 = vmatmul.f32.gmra.mxu0 %v1250
        %v1282 = vpop.f32.mrf.mxu0
        %v1283 = vadd.f32 %v1244, %v1282
        %1284 = vmatmul.f32.gmra.mxu0 %v1253
        %v1285 = vpop.f32.mrf.mxu0
        %v1286 = vadd.f32 %v1244, %v1285
        %1287 = vmatmul.f32.gmra.mxu0 %v1256
        %v1288 = vpop.f32.mrf.mxu0
        %v1289 = vadd.f32 %v1244, %v1288
        %1290 = vdwg.mxu0
        %v1291 = vmax.f32 %v1280, 0.0
        %v1292 = vmax.f32 %v1283, 0.0
        %v1293 = vmax.f32 %v1286, 0.0
        %v1294 = vmax.f32 %v1289, 0.0
        %v1295 = vld [vmem:[#allocation5] sm:$0xff]
        %v1296 = vld [vmem:[#allocation5 + $0x8] sm:$0xff]
        %v1297 = vld [vmem:[#allocation5 + $0x10] sm:$0xff]
        %v1298 = vld [vmem:[#allocation5 + $0x18] sm:$0xff]
        %v1299 = vld [vmem:[#allocation5 + $0x20] sm:$0xff]
        %v1300 = vld [vmem:[#allocation5 + $0x28] sm:$0xff]
        %v1301 = vld [vmem:[#allocation5 + $0x30] sm:$0xff]
        %v1302 = vld [vmem:[#allocation5 + $0x38] sm:$0xff]
        %v1303 = vperm.slane %v387, 5
        %vm1304 = vcmask 523264
        %v1306 = vsel %vm1304, %v1291, 0
        %v1309 = vsel %vm1304, %v1292, 0
        %v1312 = vsel %vm1304, %v1293, 0
        %v1315 = vsel %vm1304, %v1294, 0
        %1317 = vmatpush.msra.mxu0 0.0
        %1318 = vmatpush.msra.mxu0 0.0
        %1319 = vmatpush.msra.mxu0 0.0
        %1320 = vmatpush.msra.mxu0 0.0
        %1321 = vmatpush.msra.mxu0 0.0
        %1322 = vmatpush.msra.mxu0 0.0
        %1323 = vmatpush.msra.mxu0 0.0
        %1324 = vmatpush.msra.mxu0 0.0
        %1325 = vmatpush.msra.mxu0 %v1302
        %1326 = vmatpush.msra.mxu0 %v1301
        %1327 = vmatpush.msra.mxu0 %v1300
        %1328 = vmatpush.msra.mxu0 %v1299
        %1329 = vmatpush.msra.mxu0 %v1298
        %1330 = vmatpush.msra.mxu0 %v1297
        %1331 = vmatpush.msra.mxu0 %v1296
        %1332 = vmatpush.msra.mxu0 %v1295
        %1333 = vmatmul.f32.gmra.mxu0 %v1306
        %v1334 = vpop.f32.mrf.mxu0
        %v1335 = vadd.f32 %v1303, %v1334
        %1336 = vmatmul.f32.gmra.mxu0 %v1309
        %v1337 = vpop.f32.mrf.mxu0
        %v1338 = vadd.f32 %v1303, %v1337
        %1339 = vmatmul.f32.gmra.mxu0 %v1312
        %v1340 = vpop.f32.mrf.mxu0
        %v1341 = vadd.f32 %v1303, %v1340
        %1342 = vmatmul.f32.gmra.mxu0 %v1315
        %v1343 = vpop.f32.mrf.mxu0
        %v1344 = vadd.f32 %v1303, %v1343
        %1345 = vdwg.mxu0
        %v1346 = vmax.f32 %v1335, 0.0
        %v1347 = vmax.f32 %v1338, 0.0
        %v1348 = vmax.f32 %v1341, 0.0
        %v1349 = vmax.f32 %v1344, 0.0
        %v1350 = vld [vmem:[%s7] sm:$0xff]
        %v1351 = vld [vmem:[%s7 + $0x8] sm:$0xff]
        %v1352 = vld [vmem:[%s7 + $0x10] sm:$0xff]
        %v1353 = vld [vmem:[%s7 + $0x18] sm:$0xff]
        %v1354 = vld [vmem:[%s7 + $0x20] sm:$0xff]
        %v1355 = vld [vmem:[%s7 + $0x28] sm:$0xff]
        %v1356 = vld [vmem:[%s7 + $0x30] sm:$0xff]
        %v1357 = vld [vmem:[%s7 + $0x38] sm:$0xff]
        %v1358 = vld [vmem:[%s7 + $0x40] sm:$0xff]
        %v1359 = vld [vmem:[%s7 + $0x48] sm:$0xff]
        %v1360 = vld [vmem:[%s7 + $0x50] sm:$0xff]
        %v1361 = vld [vmem:[%s7 + $0x58] sm:$0xff]
        %v1362 = vld [vmem:[%s7 + $0x60] sm:$0xff]
        %v1363 = vld [vmem:[%s7 + $0x68] sm:$0xff]
        %v1364 = vld [vmem:[%s7 + $0x70] sm:$0xff]
        %v1365 = vld [vmem:[%s7 + $0x78] sm:$0xff]
        %v1366 = vld [vmem:[%s7 + $0x80] sm:$0xff]
        %v1367 = vld [vmem:[%s7 + $0x88] sm:$0xff]
        %v1368 = vld [vmem:[%s7 + $0x90] sm:$0xff]
        %v1369 = vld [vmem:[%s7 + $0x98] sm:$0xff]
        %v1370 = vld [vmem:[%s7 + $0xa0] sm:$0xff]
        %v1371 = vld [vmem:[%s7 + $0xa8] sm:$0xff]
        %v1372 = vld [vmem:[%s7 + $0xb0] sm:$0xff]
        %v1373 = vld [vmem:[%s7 + $0xb8] sm:$0xff]
        %v1374 = vld [vmem:[%s7 + $0xc0] sm:$0xff]
        %v1375 = vld [vmem:[%s7 + $0xc8] sm:$0xff]
        %v1376 = vld [vmem:[%s7 + $0xd0] sm:$0xff]
        %v1377 = vld [vmem:[%s7 + $0xd8] sm:$0xff]
        %v1378 = vld [vmem:[%s7 + $0xe0] sm:$0xff]
        %v1379 = vld [vmem:[%s7 + $0xe8] sm:$0xff]
        %v1380 = vld [vmem:[%s7 + $0xf0] sm:$0xff]
        %v1381 = vld [vmem:[%s7 + $0xf8] sm:$0xff]
        %v1382 = vld [vmem:[%s7 + $0x100] sm:$0xff]
        %v1383 = vld [vmem:[%s7 + $0x108] sm:$0xff]
        %v1384 = vld [vmem:[%s7 + $0x110] sm:$0xff]
        %v1385 = vld [vmem:[%s7 + $0x118] sm:$0xff]
        %v1386 = vld [vmem:[%s7 + $0x120] sm:$0xff]
        %v1387 = vld [vmem:[%s7 + $0x128] sm:$0xff]
        %v1388 = vld [vmem:[%s7 + $0x130] sm:$0xff]
        %v1389 = vld [vmem:[%s7 + $0x138] sm:$0xff]
        %v1390 = vld [vmem:[%s7 + $0x140] sm:$0xff]
        %v1391 = vld [vmem:[%s7 + $0x148] sm:$0xff]
        %v1392 = vld [vmem:[%s7 + $0x150] sm:$0xff]
        %v1393 = vld [vmem:[%s7 + $0x158] sm:$0xff]
        %v1394 = vld [vmem:[%s7 + $0x160] sm:$0xff]
        %v1395 = vld [vmem:[%s7 + $0x168] sm:$0xff]
        %v1396 = vld [vmem:[%s7 + $0x170] sm:$0xff]
        %v1397 = vld [vmem:[%s7 + $0x178] sm:$0xff]
        %v1398 = vld [vmem:[%s7 + $0x180] sm:$0xff]
        %v1399 = vld [vmem:[%s7 + $0x188] sm:$0xff]
        %v1400 = vld [vmem:[%s7 + $0x190] sm:$0xff]
        %v1401 = vld [vmem:[%s7 + $0x198] sm:$0xff]
        %v1402 = vld [vmem:[%s7 + $0x1a0] sm:$0xff]
        %v1403 = vld [vmem:[%s7 + $0x1a8] sm:$0xff]
        %v1404 = vld [vmem:[%s7 + $0x1b0] sm:$0xff]
        %v1405 = vld [vmem:[%s7 + $0x1b8] sm:$0xff]
        %v1406 = vld [vmem:[%s7 + $0x1c0] sm:$0xff]
        %v1407 = vld [vmem:[%s7 + $0x1c8] sm:$0xff]
        %v1408 = vld [vmem:[%s7 + $0x1d0] sm:$0xff]
        %v1409 = vld [vmem:[%s7 + $0x1d8] sm:$0xff]
        %v1410 = vld [vmem:[%s7 + $0x1e0] sm:$0xff]
        %v1411 = vld [vmem:[%s7 + $0x1e8] sm:$0xff]
        %v1412 = vld [vmem:[%s7 + $0x1f0] sm:$0xff]
        %v1413 = vld [vmem:[%s7 + $0x1f8] sm:$0xff]
        %v1414 = vld [vmem:[%s7 + $0x200] sm:$0xff]
        %v1415 = vld [vmem:[%s7 + $0x208] sm:$0xff]
        %v1416 = vld [vmem:[%s7 + $0x210] sm:$0xff]
        %v1417 = vld [vmem:[%s7 + $0x218] sm:$0xff]
        %v1418 = vld [vmem:[%s7 + $0x220] sm:$0xff]
        %v1419 = vld [vmem:[%s7 + $0x228] sm:$0xff]
        %v1420 = vld [vmem:[%s7 + $0x230] sm:$0xff]
        %v1421 = vld [vmem:[%s7 + $0x238] sm:$0xff]
        %v1422 = vld [vmem:[%s7 + $0x240] sm:$0xff]
        %v1423 = vld [vmem:[%s7 + $0x248] sm:$0xff]
        %v1424 = vld [vmem:[%s7 + $0x250] sm:$0xff]
        %v1425 = vld [vmem:[%s7 + $0x258] sm:$0xff]
        %v1426 = vld [vmem:[%s7 + $0x260] sm:$0xff]
        %v1427 = vld [vmem:[%s7 + $0x268] sm:$0xff]
        %v1428 = vld [vmem:[%s7 + $0x270] sm:$0xff]
        %v1429 = vld [vmem:[%s7 + $0x278] sm:$0xff]
        %v1430 = vld [vmem:[%s7 + $0x280] sm:$0xff]
        %v1431 = vld [vmem:[%s7 + $0x288] sm:$0xff]
        %v1432 = vld [vmem:[%s7 + $0x290] sm:$0xff]
        %v1433 = vld [vmem:[%s7 + $0x298] sm:$0xff]
        %v1434 = vld [vmem:[%s7 + $0x2a0] sm:$0xff]
        %v1435 = vld [vmem:[%s7 + $0x2a8] sm:$0xff]
        %v1436 = vld [vmem:[%s7 + $0x2b0] sm:$0xff]
        %v1437 = vld [vmem:[%s7 + $0x2b8] sm:$0xff]
        %v1438 = vld [vmem:[%s7 + $0x2c0] sm:$0xff]
        %v1439 = vld [vmem:[%s7 + $0x2c8] sm:$0xff]
        %v1440 = vld [vmem:[%s7 + $0x2d0] sm:$0xff]
        %v1441 = vld [vmem:[%s7 + $0x2d8] sm:$0xff]
        %v1442 = vld [vmem:[%s7 + $0x2e0] sm:$0xff]
        %v1443 = vld [vmem:[%s7 + $0x2e8] sm:$0xff]
        %v1444 = vld [vmem:[%s7 + $0x2f0] sm:$0xff]
        %v1445 = vld [vmem:[%s7 + $0x2f8] sm:$0xff]
        %v1446 = vld [vmem:[%s7 + $0x300] sm:$0xff]
        %v1447 = vld [vmem:[%s7 + $0x308] sm:$0xff]
        %v1448 = vld [vmem:[%s7 + $0x310] sm:$0xff]
        %v1449 = vld [vmem:[%s7 + $0x318] sm:$0xff]
        %v1450 = vld [vmem:[%s7 + $0x320] sm:$0xff]
        %v1451 = vld [vmem:[%s7 + $0x328] sm:$0xff]
        %v1452 = vld [vmem:[%s7 + $0x330] sm:$0xff]
        %v1453 = vld [vmem:[%s7 + $0x338] sm:$0xff]
        %v1454 = vld [vmem:[%s7 + $0x340] sm:$0xff]
        %v1455 = vld [vmem:[%s7 + $0x348] sm:$0xff]
        %v1456 = vld [vmem:[%s7 + $0x350] sm:$0xff]
        %v1457 = vld [vmem:[%s7 + $0x358] sm:$0xff]
        %v1458 = vld [vmem:[%s7 + $0x360] sm:$0xff]
        %v1459 = vld [vmem:[%s7 + $0x368] sm:$0xff]
        %v1460 = vld [vmem:[%s7 + $0x370] sm:$0xff]
        %v1461 = vld [vmem:[%s7 + $0x378] sm:$0xff]
        %v1462 = vperm.slane %v387, 6
        %v1463 = vperm.slane %v388, 6
        %v1464 = vperm.slane %v389, 6
        %v1465 = vperm.slane %v390, 6
        %v1466 = vperm.slane %v391, 6
        %v1467 = vperm.slane %v392, 6
        %v1468 = vperm.slane %v393, 6
        %1469 = vmatpush.msra.mxu0 %v1455
        %1470 = vmatpush.msra.mxu0 %v1448
        %1471 = vmatpush.msra.mxu0 %v1441
        %1472 = vmatpush.msra.mxu0 %v1434
        %1473 = vmatpush.msra.mxu0 %v1427
        %1474 = vmatpush.msra.mxu0 %v1420
        %1475 = vmatpush.msra.mxu0 %v1413
        %1476 = vmatpush.msra.mxu0 %v1406
        %1477 = vmatpush.msra.mxu0 %v1399
        %1478 = vmatpush.msra.mxu0 %v1392
        %1479 = vmatpush.msra.mxu0 %v1385
        %1480 = vmatpush.msra.mxu0 %v1378
        %1481 = vmatpush.msra.mxu0 %v1371
        %1482 = vmatpush.msra.mxu0 %v1364
        %1483 = vmatpush.msra.mxu0 %v1357
        %1484 = vmatpush.msra.mxu0 %v1350
        %1485 = vmatmul.f32.gmra.mxu0 %v1346
        %v1486 = vpop.f32.mrf.mxu0
        %v1487 = vadd.f32 %v1462, %v1486
        %1488 = vmatmul.f32.gmra.mxu0 %v1347
        %v1489 = vpop.f32.mrf.mxu0
        %v1490 = vadd.f32 %v1462, %v1489
        %1491 = vmatmul.f32.gmra.mxu0 %v1348
        %v1492 = vpop.f32.mrf.mxu0
        %v1493 = vadd.f32 %v1462, %v1492
        %1494 = vmatmul.f32.gmra.mxu0 %v1349
        %v1495 = vpop.f32.mrf.mxu0
        %v1496 = vadd.f32 %v1462, %v1495
        %1497 = vdwg.mxu0
        %1498 = vmatpush.msra.mxu0 %v1456
        %1499 = vmatpush.msra.mxu0 %v1449
        %1500 = vmatpush.msra.mxu0 %v1442
        %1501 = vmatpush.msra.mxu0 %v1435
        %1502 = vmatpush.msra.mxu0 %v1428
        %1503 = vmatpush.msra.mxu0 %v1421
        %1504 = vmatpush.msra.mxu0 %v1414
        %1505 = vmatpush.msra.mxu0 %v1407
        %1506 = vmatpush.msra.mxu0 %v1400
        %1507 = vmatpush.msra.mxu0 %v1393
        %1508 = vmatpush.msra.mxu0 %v1386
        %1509 = vmatpush.msra.mxu0 %v1379
        %1510 = vmatpush.msra.mxu0 %v1372
        %1511 = vmatpush.msra.mxu0 %v1365
        %1512 = vmatpush.msra.mxu0 %v1358
        %1513 = vmatpush.msra.mxu0 %v1351
        %1514 = vmatmul.f32.gmra.mxu0 %v1346
        %v1515 = vpop.f32.mrf.mxu0
        %v1516 = vadd.f32 %v1463, %v1515
        %1517 = vmatmul.f32.gmra.mxu0 %v1347
        %v1518 = vpop.f32.mrf.mxu0
        %v1519 = vadd.f32 %v1463, %v1518
        %1520 = vmatmul.f32.gmra.mxu0 %v1348
        %v1521 = vpop.f32.mrf.mxu0
        %v1522 = vadd.f32 %v1463, %v1521
        %1523 = vmatmul.f32.gmra.mxu0 %v1349
        %v1524 = vpop.f32.mrf.mxu0
        %v1525 = vadd.f32 %v1463, %v1524
        %1526 = vdwg.mxu0
        %1527 = vmatpush.msra.mxu0 %v1457
        %1528 = vmatpush.msra.mxu0 %v1450
        %1529 = vmatpush.msra.mxu0 %v1443
        %1530 = vmatpush.msra.mxu0 %v1436
        %1531 = vmatpush.msra.mxu0 %v1429
        %1532 = vmatpush.msra.mxu0 %v1422
        %1533 = vmatpush.msra.mxu0 %v1415
        %1534 = vmatpush.msra.mxu0 %v1408
        %1535 = vmatpush.msra.mxu0 %v1401
        %1536 = vmatpush.msra.mxu0 %v1394
        %1537 = vmatpush.msra.mxu0 %v1387
        %1538 = vmatpush.msra.mxu0 %v1380
        %1539 = vmatpush.msra.mxu0 %v1373
        %1540 = vmatpush.msra.mxu0 %v1366
        %1541 = vmatpush.msra.mxu0 %v1359
        %1542 = vmatpush.msra.mxu0 %v1352
        %1543 = vmatmul.f32.gmra.mxu0 %v1346
        %v1544 = vpop.f32.mrf.mxu0
        %v1545 = vadd.f32 %v1464, %v1544
        %1546 = vmatmul.f32.gmra.mxu0 %v1347
        %v1547 = vpop.f32.mrf.mxu0
        %v1548 = vadd.f32 %v1464, %v1547
        %1549 = vmatmul.f32.gmra.mxu0 %v1348
        %v1550 = vpop.f32.mrf.mxu0
        %v1551 = vadd.f32 %v1464, %v1550
        %1552 = vmatmul.f32.gmra.mxu0 %v1349
        %v1553 = vpop.f32.mrf.mxu0
        %v1554 = vadd.f32 %v1464, %v1553
        %1555 = vdwg.mxu0
        %1556 = vmatpush.msra.mxu0 %v1458
        %1557 = vmatpush.msra.mxu0 %v1451
        %1558 = vmatpush.msra.mxu0 %v1444
        %1559 = vmatpush.msra.mxu0 %v1437
        %1560 = vmatpush.msra.mxu0 %v1430
        %1561 = vmatpush.msra.mxu0 %v1423
        %1562 = vmatpush.msra.mxu0 %v1416
        %1563 = vmatpush.msra.mxu0 %v1409
        %1564 = vmatpush.msra.mxu0 %v1402
        %1565 = vmatpush.msra.mxu0 %v1395
        %1566 = vmatpush.msra.mxu0 %v1388
        %1567 = vmatpush.msra.mxu0 %v1381
        %1568 = vmatpush.msra.mxu0 %v1374
        %1569 = vmatpush.msra.mxu0 %v1367
        %1570 = vmatpush.msra.mxu0 %v1360
        %1571 = vmatpush.msra.mxu0 %v1353
        %1572 = vmatmul.f32.gmra.mxu0 %v1346
        %v1573 = vpop.f32.mrf.mxu0
        %v1574 = vadd.f32 %v1465, %v1573
        %1575 = vmatmul.f32.gmra.mxu0 %v1347
        %v1576 = vpop.f32.mrf.mxu0
        %v1577 = vadd.f32 %v1465, %v1576
        %1578 = vmatmul.f32.gmra.mxu0 %v1348
        %v1579 = vpop.f32.mrf.mxu0
        %v1580 = vadd.f32 %v1465, %v1579
        %1581 = vmatmul.f32.gmra.mxu0 %v1349
        %v1582 = vpop.f32.mrf.mxu0
        %v1583 = vadd.f32 %v1465, %v1582
        %1584 = vdwg.mxu0
        %1585 = vmatpush.msra.mxu0 %v1459
        %1586 = vmatpush.msra.mxu0 %v1452
        %1587 = vmatpush.msra.mxu0 %v1445
        %1588 = vmatpush.msra.mxu0 %v1438
        %1589 = vmatpush.msra.mxu0 %v1431
        %1590 = vmatpush.msra.mxu0 %v1424
        %1591 = vmatpush.msra.mxu0 %v1417
        %1592 = vmatpush.msra.mxu0 %v1410
        %1593 = vmatpush.msra.mxu0 %v1403
        %1594 = vmatpush.msra.mxu0 %v1396
        %1595 = vmatpush.msra.mxu0 %v1389
        %1596 = vmatpush.msra.mxu0 %v1382
        %1597 = vmatpush.msra.mxu0 %v1375
        %1598 = vmatpush.msra.mxu0 %v1368
        %1599 = vmatpush.msra.mxu0 %v1361
        %1600 = vmatpush.msra.mxu0 %v1354
        %1601 = vmatmul.f32.gmra.mxu0 %v1346
        %v1602 = vpop.f32.mrf.mxu0
        %v1603 = vadd.f32 %v1466, %v1602
        %1604 = vmatmul.f32.gmra.mxu0 %v1347
        %v1605 = vpop.f32.mrf.mxu0
        %v1606 = vadd.f32 %v1466, %v1605
        %1607 = vmatmul.f32.gmra.mxu0 %v1348
        %v1608 = vpop.f32.mrf.mxu0
        %v1609 = vadd.f32 %v1466, %v1608
        %1610 = vmatmul.f32.gmra.mxu0 %v1349
        %v1611 = vpop.f32.mrf.mxu0
        %v1612 = vadd.f32 %v1466, %v1611
        %1613 = vdwg.mxu0
        %1614 = vmatpush.msra.mxu0 %v1460
        %1615 = vmatpush.msra.mxu0 %v1453
        %1616 = vmatpush.msra.mxu0 %v1446
        %1617 = vmatpush.msra.mxu0 %v1439
        %1618 = vmatpush.msra.mxu0 %v1432
        %1619 = vmatpush.msra.mxu0 %v1425
        %1620 = vmatpush.msra.mxu0 %v1418
        %1621 = vmatpush.msra.mxu0 %v1411
        %1622 = vmatpush.msra.mxu0 %v1404
        %1623 = vmatpush.msra.mxu0 %v1397
        %1624 = vmatpush.msra.mxu0 %v1390
        %1625 = vmatpush.msra.mxu0 %v1383
        %1626 = vmatpush.msra.mxu0 %v1376
        %1627 = vmatpush.msra.mxu0 %v1369
        %1628 = vmatpush.msra.mxu0 %v1362
        %1629 = vmatpush.msra.mxu0 %v1355
        %1630 = vmatmul.f32.gmra.mxu0 %v1346
        %v1631 = vpop.f32.mrf.mxu0
        %v1632 = vadd.f32 %v1467, %v1631
        %1633 = vmatmul.f32.gmra.mxu0 %v1347
        %v1634 = vpop.f32.mrf.mxu0
        %v1635 = vadd.f32 %v1467, %v1634
        %1636 = vmatmul.f32.gmra.mxu0 %v1348
        %v1637 = vpop.f32.mrf.mxu0
        %v1638 = vadd.f32 %v1467, %v1637
        %1639 = vmatmul.f32.gmra.mxu0 %v1349
        %v1640 = vpop.f32.mrf.mxu0
        %v1641 = vadd.f32 %v1467, %v1640
        %1642 = vdwg.mxu0
        %1643 = vmatpush.msra.mxu0 %v1461
        %1644 = vmatpush.msra.mxu0 %v1454
        %1645 = vmatpush.msra.mxu0 %v1447
        %1646 = vmatpush.msra.mxu0 %v1440
        %1647 = vmatpush.msra.mxu0 %v1433
        %1648 = vmatpush.msra.mxu0 %v1426
        %1649 = vmatpush.msra.mxu0 %v1419
        %1650 = vmatpush.msra.mxu0 %v1412
        %1651 = vmatpush.msra.mxu0 %v1405
        %1652 = vmatpush.msra.mxu0 %v1398
        %1653 = vmatpush.msra.mxu0 %v1391
        %1654 = vmatpush.msra.mxu0 %v1384
        %1655 = vmatpush.msra.mxu0 %v1377
        %1656 = vmatpush.msra.mxu0 %v1370
        %1657 = vmatpush.msra.mxu0 %v1363
        %1658 = vmatpush.msra.mxu0 %v1356
        %1659 = vmatmul.f32.gmra.mxu0 %v1346
        %v1660 = vpop.f32.mrf.mxu0
        %v1661 = vadd.f32 %v1468, %v1660
        %1662 = vmatmul.f32.gmra.mxu0 %v1347
        %v1663 = vpop.f32.mrf.mxu0
        %v1664 = vadd.f32 %v1468, %v1663
        %1665 = vmatmul.f32.gmra.mxu0 %v1348
        %v1666 = vpop.f32.mrf.mxu0
        %v1667 = vadd.f32 %v1468, %v1666
        %1668 = vmatmul.f32.gmra.mxu0 %v1349
        %v1669 = vpop.f32.mrf.mxu0
        %v1670 = vadd.f32 %v1468, %v1669
        %1671 = vdwg.mxu0
        %v1672 = vtanh.pop %v1487
        %v1673 = vtanh.pop %v1516
        %v1674 = vtanh.pop %v1545
        %v1675 = vtanh.pop %v1574
        %v1676 = vtanh.pop %v1603
        %v1677 = vtanh.pop %v1632
        %v1678 = vtanh.pop %v1661
        %v1679 = vtanh.pop %v1490
        %v1680 = vtanh.pop %v1519
        %v1681 = vtanh.pop %v1548
        %v1682 = vtanh.pop %v1577
        %v1683 = vtanh.pop %v1606
        %v1684 = vtanh.pop %v1635
        %v1685 = vtanh.pop %v1664
        %v1686 = vtanh.pop %v1493
        %v1687 = vtanh.pop %v1522
        %v1688 = vtanh.pop %v1551
        %v1689 = vtanh.pop %v1580
        %v1690 = vtanh.pop %v1609
        %v1691 = vtanh.pop %v1638
        %v1692 = vtanh.pop %v1667
        %v1693 = vtanh.pop %v1496
        %v1694 = vtanh.pop %v1525
        %v1695 = vtanh.pop %v1554
        %v1696 = vtanh.pop %v1583
        %v1697 = vtanh.pop %v1612
        %v1698 = vtanh.pop %v1641
        %v1699 = vtanh.pop %v1670
        %1700 = vst [vmem:[%s384] sm:$0xff] %v1672
        %1701 = vst [vmem:[%s384 + $0x8] sm:$0xff] %v1673
        %1702 = vst [vmem:[%s384 + $0x10] sm:$0xff] %v1674
        %1703 = vst [vmem:[%s384 + $0x18] sm:$0xff] %v1675
        %1704 = vst [vmem:[%s384 + $0x20] sm:$0xff] %v1676
        %1705 = vst [vmem:[%s384 + $0x28] sm:$0xff] %v1677
        %1706 = vst.msk [vmem:[%s384 + $0x30] sm:$0xff] %vm620, %v1678
        %1707 = vst [vmem:[%s384 + $0x38] sm:$0xff] %v1679
        %1708 = vst [vmem:[%s384 + $0x40] sm:$0xff] %v1680
        %1709 = vst [vmem:[%s384 + $0x48] sm:$0xff] %v1681
        %1710 = vst [vmem:[%s384 + $0x50] sm:$0xff] %v1682
        %1711 = vst [vmem:[%s384 + $0x58] sm:$0xff] %v1683
        %1712 = vst [vmem:[%s384 + $0x60] sm:$0xff] %v1684
        %1713 = vst.msk [vmem:[%s384 + $0x68] sm:$0xff] %vm620, %v1685
        %1714 = vst [vmem:[%s384 + $0x70] sm:$0xff] %v1686
        %1715 = vst [vmem:[%s384 + $0x78] sm:$0xff] %v1687
        %1716 = vst [vmem:[%s384 + $0x80] sm:$0xff] %v1688
        %1717 = vst [vmem:[%s384 + $0x88] sm:$0xff] %v1689
        %1718 = vst [vmem:[%s384 + $0x90] sm:$0xff] %v1690
        %1719 = vst [vmem:[%s384 + $0x98] sm:$0xff] %v1691
        %1720 = vst.msk [vmem:[%s384 + $0xa0] sm:$0xff] %vm620, %v1692
        %1721 = vst [vmem:[%s384 + $0xa8] sm:$0xff] %v1693
        %1722 = vst [vmem:[%s384 + $0xb0] sm:$0xff] %v1694
        %1723 = vst [vmem:[%s384 + $0xb8] sm:$0xff] %v1695
        %1724 = vst [vmem:[%s384 + $0xc0] sm:$0xff] %v1696
        %1725 = vst [vmem:[%s384 + $0xc8] sm:$0xff] %v1697
        %1726 = vst [vmem:[%s384 + $0xd0] sm:$0xff] %v1698
        %1727 = vst.msk [vmem:[%s384 + $0xd8] sm:$0xff] %vm620, %v1699
        %s1728 = sand.u32 %s229, 1
        %s1729 = scalar_lea.sflag [#allocation4], %s1728
        %s1730 = sand.u32 %s229, 1
        %s1731 = smul.addr %s1730, 224
        %s1732 = scalar_lea.vmem [#allocation8], %s1731
        // Predicated region
        $region69: #{new_autoencoder_forward.1} parent=55 // pred_check
          %p1733 = pneg %p239
        $region70: #{new_autoencoder_forward.1} parent=55 // pred_check_branch
          %1735 = sbr.rel (%p1733) target = $region72
        $region71: #{new_autoencoder_forward.1} parent=55 // pred_region
          %s1736 = smul.u32 4, %s27
          %1738 = vsyncadd %s1729, 0
          %s1739 = smul.addr %s1736, 7
          %s1740 = smul.addr %s1739, 8
          %s1741 = scalar_lea.hbm %s9, %s1740
          %s1742 = sshll.u32 %s1732, 4
          %s1743 = int_to_ptr.vmem [resolvable:$true] %s1742
          %s1744 = sshll.u32 %s1741, 4
          %s1745 = int_to_ptr.hbm [resolvable:$true] %s1744
          %1750 = dma.vmem_to_hbm [thread:$0]  %s1743, 3584, %s1745, %s1729, 896, 896, 56
        $region72: #{new_autoencoder_forward.1} parent=55 // pred_fallthru
          _
      $region56: #{new_autoencoder_forward.1} parent=5 // pred_fallthru
        _
      %p1751 = scmp.le.s32.totalorder 2, %s22
      // Predicated region
      $region73: #{new_autoencoder_forward.1} parent=5 // pred_check
        %p1752 = pneg %p1751
      $region74: #{new_autoencoder_forward.1} parent=5 // pred_check_branch
        %1754 = sbr.rel (%p1752) target = $region76
      $region75: #{new_autoencoder_forward.1} parent=5 // pred_region
        %s1755 = ssub.s32 %s22, 2
        // Predicated region
        $region77: #{new_autoencoder_forward.1} parent=75 // pred_check
          %p1756 = pneg %p245
        $region78: #{new_autoencoder_forward.1} parent=75 // pred_check_branch
          %1758 = sbr.rel (%p1756) target = $region80
        $region79: #{new_autoencoder_forward.1} parent=75 // pred_region
          %s1759 = sand.u32 %s230, 1
          %s1760 = scalar_lea.sflag [#allocation4], %s1759
          %s1761 = sand.u32 %s230, 1
          %s1762 = smul.addr %s1761, 224
          %s1763 = scalar_lea.vmem [#allocation8], %s1762
          %1765 = dma.done %s1760, 3584
        $region80: #{new_autoencoder_forward.1} parent=75 // pred_fallthru
          _
      $region76: #{new_autoencoder_forward.1} parent=5 // pred_fallthru
        _
    $region6: #{new_autoencoder_forward.1} parent=1 // loop_footer
      %s26 = sadd.s32 1, %s22
    $region7: #{new_autoencoder_forward.1} parent=1 // loop_footer_branch
      %21 = sbr.rel target = $region3
    $region8: #{new_autoencoder_forward.1} parent=1 // loop_exit
      _
    %1766 = vsyncpa [#allocation3], 1
    %s1767 = scalar_lea.sflag [#allocation3], 1
    %1768 = vsyncpa %s1767, 1
    %1769 = vsyncpa [#allocation6], 1
    %1770 = vsyncpa [#allocation4], 1
    %s1771 = scalar_lea.sflag [#allocation4], 1
    %1772 = vsyncpa %s1771, 1

</llo_original>
